<compile_context>
chip_gen: v7x
topology: tpu7x:2x2x1
jax: 0.10.0
libtpu: 0.0.40
codegen_flags: <defaults>
</compile_context>

<pallas_src>
import functools

import jax
import jax.numpy as jnp
from jax.experimental import pallas as pl
from jax.experimental.pallas import tpu as pltpu


# ----------------------------- Pallas kernels -----------------------------

def _full_spec(shape):
    # Full-array block resident in VMEM (for gridless calls).
    return pl.BlockSpec(shape, lambda *_: (0,) * len(shape))


def _signed_layer_kernel(ap_ref, an_ref, xfull_ref, xself_ref,
                         wa_ref, wb_ref, wc_ref, o_ref):
    """Fused signed-GCN layer: one row-tile of [h_pos | h_neg].

    out_tile = tanh( (A_pos_tile @ X) @ WA + (A_neg_tile @ X) @ WB
                     + X_tile @ WC )

    WA / WB / WC are block-structured ([.. | ..] over the pos/neg output
    columns), so both signs are produced in a single pass while A_pos / A_neg
    are read exactly once.  Adjacency tiles are bf16 (MXU input only); all
    accumulation and elementwise math is f32.
    """
    x_bf = xfull_ref[...].astype(jnp.bfloat16)
    agg_p = jnp.dot(ap_ref[...], x_bf, preferred_element_type=jnp.float32)
    agg_n = jnp.dot(an_ref[...], x_bf, preferred_element_type=jnp.float32)
    pre = (jnp.dot(agg_p, wa_ref[...], preferred_element_type=jnp.float32)
           + jnp.dot(agg_n, wb_ref[...], preferred_element_type=jnp.float32)
           + jnp.dot(xself_ref[...], wc_ref[...],
                     preferred_element_type=jnp.float32))
    o_ref[...] = jnp.tanh(pre)


def _fused_loss_kernel(pzi_ref, pzj_ref, pzk_ref, nzi_ref, nzj_ref, nzk_ref,
                       ohp_ref, ohn_ref, wreg_ref, o_ref, *, lamb):
    """Both hinge (triplet) losses + regression NLL in one reduction kernel."""
    d = pzi_ref.shape[1]
    w_i = wreg_ref[0:d, :]          # static row slices of the whole weight ref
    w_j = wreg_ref[d:2 * d, :]

    def hinge_sum(zi, zj, zk):
        dij = zi - zj
        djk = zj - zk
        nij = jnp.sum(dij * dij, axis=1, keepdims=True)
        njk = jnp.sum(djk * djk, axis=1, keepdims=True)
        return jnp.sum(jnp.maximum(nij - njk, 0.0))

    def nll_sum(zi, zj, onehot):
        # logits of concat([zi, zj], 1) @ W_reg without materializing the concat
        logits = (jnp.dot(zi, w_i, preferred_element_type=jnp.float32)
                  + jnp.dot(zj, w_j, preferred_element_type=jnp.float32))
        m = jnp.max(logits, axis=1, keepdims=True)
        shifted = logits - m
        lse = jnp.log(jnp.sum(jnp.exp(shifted), axis=1, keepdims=True))
        log_soft = shifted - lse
        return -jnp.sum(log_soft * onehot)

    pzi, pzj, pzk = pzi_ref[...], pzj_ref[...], pzk_ref[...]
    nzi, nzj, nzk = nzi_ref[...], nzj_ref[...], nzk_ref[...]

    e_pos = pzi_ref.shape[0]
    e_neg = nzi_ref.shape[0]
    loss_pos = hinge_sum(pzi, pzj, pzk) / e_pos
    loss_neg = hinge_sum(nzi, nzj, nzk) / e_neg
    regress = (nll_sum(pzi, pzj, ohp_ref[...])
               + nll_sum(nzi, nzj, ohn_ref[...])) / (e_pos + e_neg)

    total = regress + lamb * (loss_pos + loss_neg)
    # lane-dense (1, 128) scalar broadcast instead of a masked sub-128 store
    o_ref[...] = total * jnp.ones((1, 128), jnp.float32)


# ------------------------------ JAX wrappers -------------------------------

def signed_layer(a_pos, a_neg, x, wa, wb, wc, *, row_tile=256):
    """h = tanh( (A_pos@X) @ WA + (A_neg@X) @ WB + X @ WC ), tiled over rows."""
    n, k = x.shape
    two_out = wa.shape[1]
    tm = n if n <= row_tile else row_tile          # row_tile is a multiple of 8
    grid = (pl.cdiv(n, tm),)
    return pl.pallas_call(
        _signed_layer_kernel,
        out_shape=jax.ShapeDtypeStruct((n, two_out), jnp.float32),
        grid=grid,
        in_specs=[
            pl.BlockSpec((tm, n), lambda i: (i, 0)),     # A_pos row tile (bf16)
            pl.BlockSpec((tm, n), lambda i: (i, 0)),     # A_neg row tile (bf16)
            pl.BlockSpec((n, k), lambda i: (0, 0)),      # X full (resident)
            pl.BlockSpec((tm, k), lambda i: (i, 0)),     # X row tile (self term)
            pl.BlockSpec(wa.shape, lambda i: (0, 0)),    # block weights resident
            pl.BlockSpec(wb.shape, lambda i: (0, 0)),
            pl.BlockSpec(wc.shape, lambda i: (0, 0)),
        ],
        out_specs=pl.BlockSpec((tm, two_out), lambda i: (i, 0)),
        compiler_params=pltpu.CompilerParams(
            dimension_semantics=("parallel",),
            vmem_limit_bytes=64 * 1024 * 1024,
        ),
    )(a_pos, a_neg, x, x, wa, wb, wc)


def fused_loss(pzi, pzj, pzk, nzi, nzj, nzk, onehot_pos, onehot_neg, w_reg, lamb):
    kernel = functools.partial(_fused_loss_kernel, lamb=lamb)
    args = (pzi, pzj, pzk, nzi, nzj, nzk, onehot_pos, onehot_neg, w_reg)
    out = pl.pallas_call(
        kernel,
        out_shape=jax.ShapeDtypeStruct((1, 128), jnp.float32),
        in_specs=[_full_spec(a.shape) for a in args],
        out_specs=_full_spec((1, 128)),
    )(*args)
    return out[0, 0]


# --------------------- weight repacking (host-side, tiny) -------------------

def prepare_init_weights(w_pos, w_neg, feat_dim):
    """w_* are the standard (2F, L0) first-layer weights -> block WA/WB/WC."""
    out = w_pos.shape[1]
    z = jnp.zeros((feat_dim, out), jnp.float32)
    wa = jnp.concatenate([w_pos[:feat_dim], z], axis=1)           # A_pos@X part
    wb = jnp.concatenate([z, w_neg[:feat_dim]], axis=1)           # A_neg@X part
    wc = jnp.concatenate([w_pos[feat_dim:], w_neg[feat_dim:]], axis=1)  # self
    return wa, wb, wc


def prepare_deep_weights(w_pos, w_neg, d):
    """w_* are the standard (3d, L) deep weights -> block WA/WB/WC (2d, 2L)."""
    out = w_pos.shape[1]
    z = jnp.zeros((d, out), jnp.float32)
    wp1, wp2, wp3 = w_pos[:d], w_pos[d:2 * d], w_pos[2 * d:]
    wn1, wn2, wn3 = w_neg[:d], w_neg[d:2 * d], w_neg[2 * d:]
    # (A_pos @ [h_pos|h_neg]) contributes Wp1 to pos cols, Wn1 to neg cols
    wa = jnp.concatenate([jnp.concatenate([wp1, z], axis=1),
                          jnp.concatenate([z, wn1], axis=1)], axis=0)
    # (A_neg @ [h_pos|h_neg]): A_neg@h_pos -> Wn2 (neg), A_neg@h_neg -> Wp2 (pos)
    wb = jnp.concatenate([jnp.concatenate([z, wn2], axis=1),
                          jnp.concatenate([wp2, z], axis=1)], axis=0)
    # self term: h_pos -> Wp3 (pos), h_neg -> Wn3 (neg)
    wc = jnp.concatenate([jnp.concatenate([wp3, z], axis=1),
                          jnp.concatenate([z, wn3], axis=1)], axis=0)
    return wa, wb, wc


# -------------------- adjacency build (hoisted out of the step) -------------

def edges_to_norm_adj(edges, n, add_self_loops=False):
    """scatter_mean(x[col], row) == (row-normalized adjacency) @ x  (bf16)."""
    row, col = edges[0], edges[1]
    keep = (row != col).astype(jnp.float32)          # remove self loops
    a = jnp.zeros((n, n), jnp.float32).at[row, col].add(keep)
    if add_self_loops:
        a = a + jnp.eye(n, dtype=jnp.float32)
    deg = jnp.sum(a, axis=1, keepdims=True)
    a = a / jnp.maximum(deg, 1.0)
    return a.astype(jnp.bfloat16)


def prepare_adjacencies(positive_edges, negative_edges, n):
    return (edges_to_norm_adj(positive_edges, n, add_self_loops=False),
            edges_to_norm_adj(negative_edges, n, add_self_loops=False),
            edges_to_norm_adj(positive_edges, n, add_self_loops=True),
            edges_to_norm_adj(negative_edges, n, add_self_loops=True))


# ------------------------------ model / forward ------------------------------

def xavier_uniform(key, shape):
    fan_in, fan_out = shape
    bound = (6.0 / (fan_in + fan_out)) ** 0.5
    return jax.random.uniform(key, shape, jnp.float32, -bound, bound)


def init_params(key, feat_dim, layers):
    ks = jax.random.split(key, 2 * len(layers) + 1)
    params = {
        "w_pos_0": xavier_uniform(ks[0], (2 * feat_dim, layers[0])),
        "w_neg_0": xavier_uniform(ks[1], (2 * feat_dim, layers[0])),
    }
    for i in range(1, len(layers)):
        params[f"w_pos_{i}"] = xavier_uniform(ks[2 * i], (3 * layers[i - 1], layers[i]))
        params[f"w_neg_{i}"] = xavier_uniform(ks[2 * i + 1], (3 * layers[i - 1], layers[i]))
    params["w_reg"] = xavier_uniform(ks[-1], (4 * layers[-1], 2))
    return params


def sgcn_forward(params, node_features, adjs, positive_edges, negative_edges,
                 target, samples_pos, samples_neg, num_layers, lamb=1.0):
    a_pos0, a_neg0, a_pos, a_neg = adjs
    feat_dim = node_features.shape[1]

    # first signed layer: h = [h_pos | h_neg], shape [N, 2*L0]
    wa, wb, wc = prepare_init_weights(params["w_pos_0"], params["w_neg_0"], feat_dim)
    h = signed_layer(a_pos0, a_neg0, node_features, wa, wb, wc)

    # deep signed layers (both signs fused; adjacency read once per layer)
    for i in range(1, num_layers):
        d = params[f"w_pos_{i}"].shape[0] // 3
        wa, wb, wc = prepare_deep_weights(params[f"w_pos_{i}"], params[f"w_neg_{i}"], d)
        h = signed_layer(a_pos, a_neg, h, wa, wb, wc)

    z = h                          # already the concatenation [h_pos | h_neg]

    # edge / sample gathers (XLA glue); reductions fused into one Pallas kernel
    pzi, pzj, pzk = z[positive_edges[0]], z[positive_edges[1]], z[samples_pos]
    nzi, nzj, nzk = z[negative_edges[0]], z[negative_edges[1]], z[samples_neg]
    ep = positive_edges.shape[1]
    onehot = jax.nn.one_hot(target, 2, dtype=jnp.float32)

    loss = fused_loss(pzi, pzj, pzk, nzi, nzj, nzk,
                      onehot[:ep], onehot[ep:], params["w_reg"], lamb)
    return loss, z


# --------------------------------- main -------------------------------------

if __name__ == "__main__":
    N, F = 32, 16                 # nodes, input feature dim
    LAYERS = [32, 32]             # args.layers
    E_POS, E_NEG = 40, 24
    LAMB = 1.0

    key = jax.random.PRNGKey(0)
    k_feat, k_pe, k_ne, k_t, k_sp, k_sn, k_params = jax.random.split(key, 7)

    node_features = jax.random.normal(k_feat, (N, F), jnp.float32)
    positive_edges = jax.random.randint(k_pe, (2, E_POS), 0, N, jnp.int32)
    negative_edges = jax.random.randint(k_ne, (2, E_NEG), 0, N, jnp.int32)
    target = jax.random.randint(k_t, (E_POS + E_NEG,), 0, 2, jnp.int32)
    # deterministic replacement for python random.choice node sampling
    samples_pos = jax.random.randint(k_sp, (E_POS,), 0, N, jnp.int32)
    samples_neg = jax.random.randint(k_sn, (E_NEG,), 0, N, jnp.int32)

    params = init_params(k_params, F, LAYERS)

    # dense normalized adjacencies built ONCE (cached across steps), bf16
    adjs = prepare_adjacencies(positive_edges, negative_edges, N)

    fwd = jax.jit(functools.partial(sgcn_forward,
                                    num_layers=len(LAYERS), lamb=LAMB))
    loss, z = fwd(params, node_features, adjs, positive_edges, negative_edges,
                  target, samples_pos, samples_neg)
    jax.block_until_ready((loss, z))
    assert z.shape == (N, 2 * LAYERS[-1])
    assert jnp.isfinite(loss)
    print("KERNEL_OK")
</pallas_src>

<mosaic_0001>
module attributes {stable_mosaic.version = 11 : i64} {
  func.func @_signed_layer_kernel(%arg0: i32, %arg1: memref<32x32xbf16, #tpu.memory_space<vmem>>, %arg2: memref<32x32xbf16, #tpu.memory_space<vmem>>, %arg3: memref<32x16xf32, #tpu.memory_space<vmem>>, %arg4: memref<32x16xf32, #tpu.memory_space<vmem>>, %arg5: memref<16x64xf32, #tpu.memory_space<vmem>>, %arg6: memref<16x64xf32, #tpu.memory_space<vmem>>, %arg7: memref<16x64xf32, #tpu.memory_space<vmem>>, %arg8: memref<32x64xf32, #tpu.memory_space<vmem>>) attributes {dimension_semantics = [#tpu.dimension_semantics<parallel>], iteration_bounds = array<i64: 1>, scalar_prefetch = 0 : i64, scratch_operands = 0 : i64, tpu.core_type = #tpu.core_type<tc>, window_params = [{transform_indices = @transform_0, window_bounds = array<i64: 32, 32>}, {transform_indices = @transform_1, window_bounds = array<i64: 32, 32>}, {pipeline_mode = #tpu.pipeline_mode<synchronous>, transform_indices = @transform_2, window_bounds = array<i64: 32, 16>}, {transform_indices = @transform_3, window_bounds = array<i64: 32, 16>}, {pipeline_mode = #tpu.pipeline_mode<synchronous>, transform_indices = @transform_4, window_bounds = array<i64: 16, 64>}, {pipeline_mode = #tpu.pipeline_mode<synchronous>, transform_indices = @transform_5, window_bounds = array<i64: 16, 64>}, {pipeline_mode = #tpu.pipeline_mode<synchronous>, transform_indices = @transform_6, window_bounds = array<i64: 16, 64>}, {transform_indices = @transform_7, window_bounds = array<i64: 32, 64>}]} {
    %c0 = arith.constant 0 : index
    %c0_0 = arith.constant 0 : index
    %0 = vector.load %arg3[%c0, %c0_0] : memref<32x16xf32, #tpu.memory_space<vmem>>, vector<32x16xf32>
    %1 = arith.truncf %0 : vector<32x16xf32> to vector<32x16xbf16>
    %c0_1 = arith.constant 0 : index
    %c0_2 = arith.constant 0 : index
    %2 = vector.load %arg1[%c0_1, %c0_2] : memref<32x32xbf16, #tpu.memory_space<vmem>>, vector<32x32xbf16>
    %cst = arith.constant dense<0.000000e+00> : vector<32x16xf32>
    %3 = tpu.matmul %2, %1, %cst {dimension_numbers = #tpu.dot_dimension_numbers<[1], [0], [0], [1], [0, 0, 1, 1], [], []>} : vector<32x32xbf16>, vector<32x16xbf16>, vector<32x16xf32> -> vector<32x16xf32>
    %c0_3 = arith.constant 0 : index
    %c0_4 = arith.constant 0 : index
    %4 = vector.load %arg2[%c0_3, %c0_4] : memref<32x32xbf16, #tpu.memory_space<vmem>>, vector<32x32xbf16>
    %cst_5 = arith.constant dense<0.000000e+00> : vector<32x16xf32>
    %5 = tpu.matmul %4, %1, %cst_5 {dimension_numbers = #tpu.dot_dimension_numbers<[1], [0], [0], [1], [0, 0, 1, 1], [], []>} : vector<32x32xbf16>, vector<32x16xbf16>, vector<32x16xf32> -> vector<32x16xf32>
    %c0_6 = arith.constant 0 : index
    %c0_7 = arith.constant 0 : index
    %6 = vector.load %arg5[%c0_6, %c0_7] : memref<16x64xf32, #tpu.memory_space<vmem>>, vector<16x64xf32>
    %cst_8 = arith.constant dense<0.000000e+00> : vector<32x64xf32>
    %7 = tpu.matmul %3, %6, %cst_8 {dimension_numbers = #tpu.dot_dimension_numbers<[1], [0], [0], [1], [0, 0, 1, 1], [], []>} : vector<32x16xf32>, vector<16x64xf32>, vector<32x64xf32> -> vector<32x64xf32>
    %c0_9 = arith.constant 0 : index
    %c0_10 = arith.constant 0 : index
    %8 = vector.load %arg6[%c0_9, %c0_10] : memref<16x64xf32, #tpu.memory_space<vmem>>, vector<16x64xf32>
    %cst_11 = arith.constant dense<0.000000e+00> : vector<32x64xf32>
    %9 = tpu.matmul %5, %8, %cst_11 {dimension_numbers = #tpu.dot_dimension_numbers<[1], [0], [0], [1], [0, 0, 1, 1], [], []>} : vector<32x16xf32>, vector<16x64xf32>, vector<32x64xf32> -> vector<32x64xf32>
    %10 = arith.addf %7, %9 : vector<32x64xf32>
    %c0_12 = arith.constant 0 : index
    %c0_13 = arith.constant 0 : index
    %11 = vector.load %arg4[%c0_12, %c0_13] : memref<32x16xf32, #tpu.memory_space<vmem>>, vector<32x16xf32>
    %c0_14 = arith.constant 0 : index
    %c0_15 = arith.constant 0 : index
    %12 = vector.load %arg7[%c0_14, %c0_15] : memref<16x64xf32, #tpu.memory_space<vmem>>, vector<16x64xf32>
    %cst_16 = arith.constant dense<0.000000e+00> : vector<32x64xf32>
    %13 = tpu.matmul %11, %12, %cst_16 {dimension_numbers = #tpu.dot_dimension_numbers<[1], [0], [0], [1], [0, 0, 1, 1], [], []>} : vector<32x16xf32>, vector<16x64xf32>, vector<32x64xf32> -> vector<32x64xf32>
    %14 = arith.addf %10, %13 : vector<32x64xf32>
    %15 = math.tanh %14 : vector<32x64xf32>
    %c0_17 = arith.constant 0 : index
    %c0_18 = arith.constant 0 : index
    %16 = vector.load %arg8[%c0_17, %c0_18] : memref<32x64xf32, #tpu.memory_space<vmem>>, vector<32x64xf32>
    tpu.vector_store %arg8[%c0_17, %c0_18], %15 {strides = array<i32>} : memref<32x64xf32, #tpu.memory_space<vmem>>, vector<32x64xf32>,
    return
  }
  func.func @transform_0(%arg0: i32) -> (i32, i32) {
    %c0_i32 = arith.constant 0 : i32
    %c0_i32_0 = arith.constant 0 : i32
    return %arg0, %c0_i32 : i32, i32
  }
  func.func @transform_1(%arg0: i32) -> (i32, i32) {
    %c0_i32 = arith.constant 0 : i32
    %c0_i32_0 = arith.constant 0 : i32
    return %arg0, %c0_i32 : i32, i32
  }
  func.func @transform_2(%arg0: i32) -> (i32, i32) {
    %c0_i32 = arith.constant 0 : i32
    %c0_i32_0 = arith.constant 0 : i32
    %c0_i32_1 = arith.constant 0 : i32
    return %c0_i32, %c0_i32_0 : i32, i32
  }
  func.func @transform_3(%arg0: i32) -> (i32, i32) {
    %c0_i32 = arith.constant 0 : i32
    %c0_i32_0 = arith.constant 0 : i32
    return %arg0, %c0_i32 : i32, i32
  }
  func.func @transform_4(%arg0: i32) -> (i32, i32) {
    %c0_i32 = arith.constant 0 : i32
    %c0_i32_0 = arith.constant 0 : i32
    %c0_i32_1 = arith.constant 0 : i32
    return %c0_i32, %c0_i32_0 : i32, i32
  }
  func.func @transform_5(%arg0: i32) -> (i32, i32) {
    %c0_i32 = arith.constant 0 : i32
    %c0_i32_0 = arith.constant 0 : i32
    %c0_i32_1 = arith.constant 0 : i32
    return %c0_i32, %c0_i32_0 : i32, i32
  }
  func.func @transform_6(%arg0: i32) -> (i32, i32) {
    %c0_i32 = arith.constant 0 : i32
    %c0_i32_0 = arith.constant 0 : i32
    %c0_i32_1 = arith.constant 0 : i32
    return %c0_i32, %c0_i32_0 : i32, i32
  }
  func.func @transform_7(%arg0: i32) -> (i32, i32) {
    %c0_i32 = arith.constant 0 : i32
    %c0_i32_0 = arith.constant 0 : i32
    return %arg0, %c0_i32 : i32, i32
  }
}

module attributes {stable_mosaic.version = 11 : i64} {
  func.func @_signed_layer_kernel(%arg0: i32, %arg1: memref<32x32xbf16, #tpu.memory_space<vmem>>, %arg2: memref<32x32xbf16, #tpu.memory_space<vmem>>, %arg3: memref<32x64xf32, #tpu.memory_space<vmem>>, %arg4: memref<32x64xf32, #tpu.memory_space<vmem>>, %arg5: memref<64x64xf32, #tpu.memory_space<vmem>>, %arg6: memref<64x64xf32, #tpu.memory_space<vmem>>, %arg7: memref<64x64xf32, #tpu.memory_space<vmem>>, %arg8: memref<32x64xf32, #tpu.memory_space<vmem>>) attributes {dimension_semantics = [#tpu.dimension_semantics<parallel>], iteration_bounds = array<i64: 1>, scalar_prefetch = 0 : i64, scratch_operands = 0 : i64, tpu.core_type = #tpu.core_type<tc>, window_params = [{transform_indices = @transform_0, window_bounds = array<i64: 32, 32>}, {transform_indices = @transform_1, window_bounds = array<i64: 32, 32>}, {pipeline_mode = #tpu.pipeline_mode<synchronous>, transform_indices = @transform_2, window_bounds = array<i64: 32, 64>}, {transform_indices = @transform_3, window_bounds = array<i64: 32, 64>}, {pipeline_mode = #tpu.pipeline_mode<synchronous>, transform_indices = @transform_4, window_bounds = array<i64: 64, 64>}, {pipeline_mode = #tpu.pipeline_mode<synchronous>, transform_indices = @transform_5, window_bounds = array<i64: 64, 64>}, {pipeline_mode = #tpu.pipeline_mode<synchronous>, transform_indices = @transform_6, window_bounds = array<i64: 64, 64>}, {transform_indices = @transform_7, window_bounds = array<i64: 32, 64>}]} {
    %c0 = arith.constant 0 : index
    %c0_0 = arith.constant 0 : index
    %0 = vector.load %arg3[%c0, %c0_0] : memref<32x64xf32, #tpu.memory_space<vmem>>, vector<32x64xf32>
    %1 = arith.truncf %0 : vector<32x64xf32> to vector<32x64xbf16>
    %c0_1 = arith.constant 0 : index
    %c0_2 = arith.constant 0 : index
    %2 = vector.load %arg1[%c0_1, %c0_2] : memref<32x32xbf16, #tpu.memory_space<vmem>>, vector<32x32xbf16>
    %cst = arith.constant dense<0.000000e+00> : vector<32x64xf32>
    %3 = tpu.matmul %2, %1, %cst {dimension_numbers = #tpu.dot_dimension_numbers<[1], [0], [0], [1], [0, 0, 1, 1], [], []>} : vector<32x32xbf16>, vector<32x64xbf16>, vector<32x64xf32> -> vector<32x64xf32>
    %c0_3 = arith.constant 0 : index
    %c0_4 = arith.constant 0 : index
    %4 = vector.load %arg2[%c0_3, %c0_4] : memref<32x32xbf16, #tpu.memory_space<vmem>>, vector<32x32xbf16>
    %cst_5 = arith.constant dense<0.000000e+00> : vector<32x64xf32>
    %5 = tpu.matmul %4, %1, %cst_5 {dimension_numbers = #tpu.dot_dimension_numbers<[1], [0], [0], [1], [0, 0, 1, 1], [], []>} : vector<32x32xbf16>, vector<32x64xbf16>, vector<32x64xf32> -> vector<32x64xf32>
    %c0_6 = arith.constant 0 : index
    %c0_7 = arith.constant 0 : index
    %6 = vector.load %arg5[%c0_6, %c0_7] : memref<64x64xf32, #tpu.memory_space<vmem>>, vector<64x64xf32>
    %cst_8 = arith.constant dense<0.000000e+00> : vector<32x64xf32>
    %7 = tpu.matmul %3, %6, %cst_8 {dimension_numbers = #tpu.dot_dimension_numbers<[1], [0], [0], [1], [0, 0, 1, 1], [], []>} : vector<32x64xf32>, vector<64x64xf32>, vector<32x64xf32> -> vector<32x64xf32>
    %c0_9 = arith.constant 0 : index
    %c0_10 = arith.constant 0 : index
    %8 = vector.load %arg6[%c0_9, %c0_10] : memref<64x64xf32, #tpu.memory_space<vmem>>, vector<64x64xf32>
    %cst_11 = arith.constant dense<0.000000e+00> : vector<32x64xf32>
    %9 = tpu.matmul %5, %8, %cst_11 {dimension_numbers = #tpu.dot_dimension_numbers<[1], [0], [0], [1], [0, 0, 1, 1], [], []>} : vector<32x64xf32>, vector<64x64xf32>, vector<32x64xf32> -> vector<32x64xf32>
    %10 = arith.addf %7, %9 : vector<32x64xf32>
    %c0_12 = arith.constant 0 : index
    %c0_13 = arith.constant 0 : index
    %11 = vector.load %arg4[%c0_12, %c0_13] : memref<32x64xf32, #tpu.memory_space<vmem>>, vector<32x64xf32>
    %c0_14 = arith.constant 0 : index
    %c0_15 = arith.constant 0 : index
    %12 = vector.load %arg7[%c0_14, %c0_15] : memref<64x64xf32, #tpu.memory_space<vmem>>, vector<64x64xf32>
    %cst_16 = arith.constant dense<0.000000e+00> : vector<32x64xf32>
    %13 = tpu.matmul %11, %12, %cst_16 {dimension_numbers = #tpu.dot_dimension_numbers<[1], [0], [0], [1], [0, 0, 1, 1], [], []>} : vector<32x64xf32>, vector<64x64xf32>, vector<32x64xf32> -> vector<32x64xf32>
    %14 = arith.addf %10, %13 : vector<32x64xf32>
    %15 = math.tanh %14 : vector<32x64xf32>
    %c0_17 = arith.constant 0 : index
    %c0_18 = arith.constant 0 : index
    %16 = vector.load %arg8[%c0_17, %c0_18] : memref<32x64xf32, #tpu.memory_space<vmem>>, vector<32x64xf32>
    tpu.vector_store %arg8[%c0_17, %c0_18], %15 {strides = array<i32>} : memref<32x64xf32, #tpu.memory_space<vmem>>, vector<32x64xf32>,
    return
  }
  func.func @transform_0(%arg0: i32) -> (i32, i32) {
    %c0_i32 = arith.constant 0 : i32
    %c0_i32_0 = arith.constant 0 : i32
    return %arg0, %c0_i32 : i32, i32
  }
  func.func @transform_1(%arg0: i32) -> (i32, i32) {
    %c0_i32 = arith.constant 0 : i32
    %c0_i32_0 = arith.constant 0 : i32
    return %arg0, %c0_i32 : i32, i32
  }
  func.func @transform_2(%arg0: i32) -> (i32, i32) {
    %c0_i32 = arith.constant 0 : i32
    %c0_i32_0 = arith.constant 0 : i32
    %c0_i32_1 = arith.constant 0 : i32
    return %c0_i32, %c0_i32_0 : i32, i32
  }
  func.func @transform_3(%arg0: i32) -> (i32, i32) {
    %c0_i32 = arith.constant 0 : i32
    %c0_i32_0 = arith.constant 0 : i32
    return %arg0, %c0_i32 : i32, i32
  }
  func.func @transform_4(%arg0: i32) -> (i32, i32) {
    %c0_i32 = arith.constant 0 : i32
    %c0_i32_0 = arith.constant 0 : i32
    %c0_i32_1 = arith.constant 0 : i32
    return %c0_i32, %c0_i32_0 : i32, i32
  }
  func.func @transform_5(%arg0: i32) -> (i32, i32) {
    %c0_i32 = arith.constant 0 : i32
    %c0_i32_0 = arith.constant 0 : i32
    %c0_i32_1 = arith.constant 0 : i32
    return %c0_i32, %c0_i32_0 : i32, i32
  }
  func.func @transform_6(%arg0: i32) -> (i32, i32) {
    %c0_i32 = arith.constant 0 : i32
    %c0_i32_0 = arith.constant 0 : i32
    %c0_i32_1 = arith.constant 0 : i32
    return %c0_i32, %c0_i32_0 : i32, i32
  }
  func.func @transform_7(%arg0: i32) -> (i32, i32) {
    %c0_i32 = arith.constant 0 : i32
    %c0_i32_0 = arith.constant 0 : i32
    return %arg0, %c0_i32 : i32, i32
  }
}

module attributes {stable_mosaic.version = 11 : i64} {
  func.func @_fused_loss_kernel(%arg0: memref<40x64xf32, #tpu.memory_space<vmem>>, %arg1: memref<40x64xf32, #tpu.memory_space<vmem>>, %arg2: memref<40x64xf32, #tpu.memory_space<vmem>>, %arg3: memref<24x64xf32, #tpu.memory_space<vmem>>, %arg4: memref<24x64xf32, #tpu.memory_space<vmem>>, %arg5: memref<24x64xf32, #tpu.memory_space<vmem>>, %arg6: memref<40x2xf32, #tpu.memory_space<vmem>>, %arg7: memref<24x2xf32, #tpu.memory_space<vmem>>, %arg8: memref<128x2xf32, #tpu.memory_space<vmem>>, %arg9: memref<1x128xf32, #tpu.memory_space<vmem>>) attributes {dimension_semantics = [], scalar_prefetch = 0 : i64, scratch_operands = 0 : i64, tpu.core_type = #tpu.core_type<tc>} {
    %c0 = arith.constant 0 : index
    %c0_0 = arith.constant 0 : index
    %0 = vector.load %arg8[%c0, %c0_0] : memref<128x2xf32, #tpu.memory_space<vmem>>, vector<64x2xf32>
    %c64 = arith.constant 64 : index
    %c0_1 = arith.constant 0 : index
    %1 = vector.load %arg8[%c64, %c0_1] : memref<128x2xf32, #tpu.memory_space<vmem>>, vector<64x2xf32>
    %c0_2 = arith.constant 0 : index
    %c0_3 = arith.constant 0 : index
    %2 = vector.load %arg0[%c0_2, %c0_3] : memref<40x64xf32, #tpu.memory_space<vmem>>, vector<40x64xf32>
    %c0_4 = arith.constant 0 : index
    %c0_5 = arith.constant 0 : index
    %3 = vector.load %arg1[%c0_4, %c0_5] : memref<40x64xf32, #tpu.memory_space<vmem>>, vector<40x64xf32>
    %c0_6 = arith.constant 0 : index
    %c0_7 = arith.constant 0 : index
    %4 = vector.load %arg2[%c0_6, %c0_7] : memref<40x64xf32, #tpu.memory_space<vmem>>, vector<40x64xf32>
    %c0_8 = arith.constant 0 : index
    %c0_9 = arith.constant 0 : index
    %5 = vector.load %arg3[%c0_8, %c0_9] : memref<24x64xf32, #tpu.memory_space<vmem>>, vector<24x64xf32>
    %c0_10 = arith.constant 0 : index
    %c0_11 = arith.constant 0 : index
    %6 = vector.load %arg4[%c0_10, %c0_11] : memref<24x64xf32, #tpu.memory_space<vmem>>, vector<24x64xf32>
    %c0_12 = arith.constant 0 : index
    %c0_13 = arith.constant 0 : index
    %7 = vector.load %arg5[%c0_12, %c0_13] : memref<24x64xf32, #tpu.memory_space<vmem>>, vector<24x64xf32>
    %8 = arith.subf %2, %3 : vector<40x64xf32>
    %9 = arith.subf %3, %4 : vector<40x64xf32>
    %10 = arith.mulf %8, %8 : vector<40x64xf32>
    %cst = arith.constant dense<0.000000e+00> : vector<40xf32>
    %11 = vector.multi_reduction <add>, %10, %cst [1] : vector<40x64xf32> to vector<40xf32>
    %12 = vector.shape_cast %11 : vector<40xf32> to vector<40x1xf32>
    %13 = arith.mulf %9, %9 : vector<40x64xf32>
    %cst_14 = arith.constant dense<0.000000e+00> : vector<40xf32>
    %14 = vector.multi_reduction <add>, %13, %cst_14 [1] : vector<40x64xf32> to vector<40xf32>
    %15 = vector.shape_cast %14 : vector<40xf32> to vector<40x1xf32>
    %16 = arith.subf %12, %15 : vector<40x1xf32>
    %cst_15 = arith.constant 0.000000e+00 : f32
    %17 = vector.broadcast %cst_15 : f32 to vector<40x1xf32>
    %18 = arith.maximumf %16, %17 : vector<40x1xf32>
    %19 = vector.shape_cast %18 : vector<40x1xf32> to vector<1x40x1xf32>
    %cst_16 = arith.constant dense<0.000000e+00> : vector<1xf32>
    %20 = vector.multi_reduction <add>, %19, %cst_16 [1, 2] : vector<1x40x1xf32> to vector<1xf32>
    %21 = vector.shape_cast %20 : vector<1xf32> to vector<1x1x1xf32>
    %22 = vector.extract %21[0, 0, 0] : f32 from vector<1x1x1xf32>
    %cst_17 = arith.constant 4.000000e+01 : f32
    %23 = arith.divf %22, %cst_17 : f32
    %24 = arith.subf %5, %6 : vector<24x64xf32>
    %25 = arith.subf %6, %7 : vector<24x64xf32>
    %26 = arith.mulf %24, %24 : vector<24x64xf32>
    %cst_18 = arith.constant dense<0.000000e+00> : vector<24xf32>
    %27 = vector.multi_reduction <add>, %26, %cst_18 [1] : vector<24x64xf32> to vector<24xf32>
    %28 = vector.shape_cast %27 : vector<24xf32> to vector<24x1xf32>
    %29 = arith.mulf %25, %25 : vector<24x64xf32>
    %cst_19 = arith.constant dense<0.000000e+00> : vector<24xf32>
    %30 = vector.multi_reduction <add>, %29, %cst_19 [1] : vector<24x64xf32> to vector<24xf32>
    %31 = vector.shape_cast %30 : vector<24xf32> to vector<24x1xf32>
    %32 = arith.subf %28, %31 : vector<24x1xf32>
    %cst_20 = arith.constant 0.000000e+00 : f32
    %33 = vector.broadcast %cst_20 : f32 to vector<24x1xf32>
    %34 = arith.maximumf %32, %33 : vector<24x1xf32>
    %35 = vector.shape_cast %34 : vector<24x1xf32> to vector<1x24x1xf32>
    %cst_21 = arith.constant dense<0.000000e+00> : vector<1xf32>
    %36 = vector.multi_reduction <add>, %35, %cst_21 [1, 2] : vector<1x24x1xf32> to vector<1xf32>
    %37 = vector.shape_cast %36 : vector<1xf32> to vector<1x1x1xf32>
    %38 = vector.extract %37[0, 0, 0] : f32 from vector<1x1x1xf32>
    %cst_22 = arith.constant 2.400000e+01 : f32
    %39 = arith.divf %38, %cst_22 : f32
    %c0_23 = arith.constant 0 : index
    %c0_24 = arith.constant 0 : index
    %40 = vector.load %arg6[%c0_23, %c0_24] : memref<40x2xf32, #tpu.memory_space<vmem>>, vector<40x2xf32>
    %cst_25 = arith.constant dense<0.000000e+00> : vector<40x2xf32>
    %41 = tpu.matmul %2, %0, %cst_25 {dimension_numbers = #tpu.dot_dimension_numbers<[1], [0], [0], [1], [0, 0, 1, 1], [], []>} : vector<40x64xf32>, vector<64x2xf32>, vector<40x2xf32> -> vector<40x2xf32>
    %cst_26 = arith.constant dense<0.000000e+00> : vector<40x2xf32>
    %42 = tpu.matmul %3, %1, %cst_26 {dimension_numbers = #tpu.dot_dimension_numbers<[1], [0], [0], [1], [0, 0, 1, 1], [], []>} : vector<40x64xf32>, vector<64x2xf32>, vector<40x2xf32> -> vector<40x2xf32>
    %43 = arith.addf %41, %42 : vector<40x2xf32>
    %cst_27 = arith.constant dense<0xFF800000> : vector<40xf32>
    %44 = vector.multi_reduction <maximumf>, %43, %cst_27 [1] : vector<40x2xf32> to vector<40xf32>
    %45 = vector.shape_cast %44 : vector<40xf32> to vector<40x1xf32>
    %46 = vector.broadcast %45 : vector<40x1xf32> to vector<40x2xf32>
    %47 = arith.subf %43, %46 : vector<40x2xf32>
    %48 = math.exp %47 : vector<40x2xf32>
    %cst_28 = arith.constant dense<0.000000e+00> : vector<40xf32>
    %49 = vector.multi_reduction <add>, %48, %cst_28 [1] : vector<40x2xf32> to vector<40xf32>
    %50 = vector.shape_cast %49 : vector<40xf32> to vector<40x1xf32>
    %51 = math.log %50 : vector<40x1xf32>
    %52 = vector.broadcast %51 : vector<40x1xf32> to vector<40x2xf32>
    %53 = arith.subf %47, %52 : vector<40x2xf32>
    %54 = arith.mulf %53, %40 : vector<40x2xf32>
    %55 = vector.shape_cast %54 : vector<40x2xf32> to vector<1x40x2xf32>
    %cst_29 = arith.constant dense<0.000000e+00> : vector<1xf32>
    %56 = vector.multi_reduction <add>, %55, %cst_29 [1, 2] : vector<1x40x2xf32> to vector<1xf32>
    %57 = vector.shape_cast %56 : vector<1xf32> to vector<1x1x1xf32>
    %58 = vector.extract %57[0, 0, 0] : f32 from vector<1x1x1xf32>
    %cst_30 = arith.constant 0.000000e+00 : f32
    %59 = arith.subf %cst_30, %58 : f32
    %c0_31 = arith.constant 0 : index
    %c0_32 = arith.constant 0 : index
    %60 = vector.load %arg7[%c0_31, %c0_32] : memref<24x2xf32, #tpu.memory_space<vmem>>, vector<24x2xf32>
    %cst_33 = arith.constant dense<0.000000e+00> : vector<24x2xf32>
    %61 = tpu.matmul %5, %0, %cst_33 {dimension_numbers = #tpu.dot_dimension_numbers<[1], [0], [0], [1], [0, 0, 1, 1], [], []>} : vector<24x64xf32>, vector<64x2xf32>, vector<24x2xf32> -> vector<24x2xf32>
    %cst_34 = arith.constant dense<0.000000e+00> : vector<24x2xf32>
    %62 = tpu.matmul %6, %1, %cst_34 {dimension_numbers = #tpu.dot_dimension_numbers<[1], [0], [0], [1], [0, 0, 1, 1], [], []>} : vector<24x64xf32>, vector<64x2xf32>, vector<24x2xf32> -> vector<24x2xf32>
    %63 = arith.addf %61, %62 : vector<24x2xf32>
    %cst_35 = arith.constant dense<0xFF800000> : vector<24xf32>
    %64 = vector.multi_reduction <maximumf>, %63, %cst_35 [1] : vector<24x2xf32> to vector<24xf32>
    %65 = vector.shape_cast %64 : vector<24xf32> to vector<24x1xf32>
    %66 = vector.broadcast %65 : vector<24x1xf32> to vector<24x2xf32>
    %67 = arith.subf %63, %66 : vector<24x2xf32>
    %68 = math.exp %67 : vector<24x2xf32>
    %cst_36 = arith.constant dense<0.000000e+00> : vector<24xf32>
    %69 = vector.multi_reduction <add>, %68, %cst_36 [1] : vector<24x2xf32> to vector<24xf32>
    %70 = vector.shape_cast %69 : vector<24xf32> to vector<24x1xf32>
    %71 = math.log %70 : vector<24x1xf32>
    %72 = vector.broadcast %71 : vector<24x1xf32> to vector<24x2xf32>
    %73 = arith.subf %67, %72 : vector<24x2xf32>
    %74 = arith.mulf %73, %60 : vector<24x2xf32>
    %75 = vector.shape_cast %74 : vector<24x2xf32> to vector<1x24x2xf32>
    %cst_37 = arith.constant dense<0.000000e+00> : vector<1xf32>
    %76 = vector.multi_reduction <add>, %75, %cst_37 [1, 2] : vector<1x24x2xf32> to vector<1xf32>
    %77 = vector.shape_cast %76 : vector<1xf32> to vector<1x1x1xf32>
    %78 = vector.extract %77[0, 0, 0] : f32 from vector<1x1x1xf32>
    %cst_38 = arith.constant 0.000000e+00 : f32
    %79 = arith.subf %cst_38, %78 : f32
    %80 = arith.addf %59, %79 : f32
    %cst_39 = arith.constant 6.400000e+01 : f32
    %81 = arith.divf %80, %cst_39 : f32
    %82 = arith.addf %23, %39 : f32
    %cst_40 = arith.constant 1.000000e+00 : f32
    %83 = arith.mulf %cst_40, %82 : f32
    %84 = arith.addf %81, %83 : f32
    %cst_41 = arith.constant 1.000000e+00 : f32
    %85 = vector.broadcast %cst_41 : f32 to vector<1x128xf32>
    %86 = vector.broadcast %84 : f32 to vector<1x128xf32>
    %87 = arith.mulf %86, %85 : vector<1x128xf32>
    %c0_42 = arith.constant 0 : index
    %c0_43 = arith.constant 0 : index
    %88 = vector.load %arg9[%c0_42, %c0_43] : memref<1x128xf32, #tpu.memory_space<vmem>>, vector<1x128xf32>
    tpu.vector_store %arg9[%c0_42, %c0_43], %87 {strides = array<i32>} : memref<1x128xf32, #tpu.memory_space<vmem>>, vector<1x128xf32>,
    return
  }
}

</mosaic_0001>

<llo_original>
// kernel: sgcn_forward.3
$region0: #{sgcn_forward.3}
  #allocation0 [shape = 'u32[]', space=smem, size = 0x4, offset = 0x4, fixed_abs, tag = 'smem constant byte address 0x4 - core index']
  #allocation1 [shape = 'u32[144,128]{1,0:T(1,128)}', space=vmem, size = 0x12000, scoped, tag = 'internal scratch']
  %s0 = inlined_call_operand.hbm [shape: bf16[32,32], index: 0, kind: input, shape index: {}]
  %s1 = inlined_call_operand.hbm [shape: bf16[32,32], index: 1, kind: input, shape index: {}]
  %s2 = inlined_call_operand.hbm [shape: f32[32,16], index: 2, kind: input, shape index: {}, may-alias: {2,3}]
  %s3 = inlined_call_operand.hbm [shape: f32[32,16], index: 3, kind: input, shape index: {}, may-alias: {2,3}]
  %s4 = inlined_call_operand.hbm [shape: f32[16,64], index: 4, kind: input, shape index: {}]
  %s5 = inlined_call_operand.hbm [shape: f32[16,64], index: 5, kind: input, shape index: {}]
  %s6 = inlined_call_operand.hbm [shape: f32[16,64], index: 6, kind: input, shape index: {}]
  %s7 = inlined_call_operand.hbm [shape: f32[32,64], index: 7, kind: output, shape index: {}]
  %s8 = sld [smem:[#allocation0]]
  $region66: #{sgcn_forward.3} parent=0
    _
  %s10 = ssub.s32 1, %s8
  %s11 = scalar_select 0, %s10, %s8
  $region1: #{sgcn_forward.3} parent=0
    #allocation2 [shape = 'u8[8192]{0}', space=vmem, size = 0x2000, scoped, tag = 'input window, operand 0, single buffered']
    #allocation3 [shape = 's32[1]{0}', space=sflag, size = 0x4, scoped, tag = 'scoped memory for sgcn_forward.3']
    #allocation4 [shape = 's32[1]{0}', space=sflag, size = 0x4, scoped, tag = 'scoped memory for sgcn_forward.3']
    #allocation5 [shape = 'u8[8192]{0}', space=vmem, size = 0x2000, scoped, tag = 'input window, operand 1, single buffered']
    #allocation6 [shape = 's32[1]{0}', space=sflag, size = 0x4, scoped, tag = 'scoped memory for sgcn_forward.3']
    #allocation7 [shape = 'u8[16384]{0}', space=vmem, size = 0x4000, scoped, tag = 'input window, operand 2, single buffered']
    #allocation8 [shape = 'u8[16384]{0}', space=vmem, size = 0x4000, scoped, tag = 'input window, operand 3, single buffered']
    #allocation9 [shape = 's32[1]{0}', space=sflag, size = 0x4, scoped, tag = 'scoped memory for sgcn_forward.3']
    #allocation10 [shape = 'u8[8192]{0}', space=vmem, size = 0x2000, scoped, tag = 'input window, operand 4, single buffered']
    #allocation11 [shape = 'u8[8192]{0}', space=vmem, size = 0x2000, scoped, tag = 'input window, operand 5, single buffered']
    #allocation12 [shape = 's32[1]{0}', space=sflag, size = 0x4, scoped, tag = 'scoped memory for sgcn_forward.3']
    #allocation13 [shape = 'u8[8192]{0}', space=vmem, size = 0x2000, scoped, tag = 'input window, operand 6, single buffered']
    #allocation14 [shape = 'u8[16384]{0}', space=vmem, size = 0x4000, scoped, tag = 'output window, operand 0, single buffered']
    %12 = vsyncpa [#allocation3], 0
    %13 = vsyncpa [#allocation6], 0
    %14 = vsyncpa [#allocation9], 0
    %15 = vsyncpa [#allocation12], 0
    %16 = vsyncpa [#allocation4], 0
    // Predicated region
    $region2: #{sgcn_forward.3} parent=1 // pred_check
      _
    $region3: #{sgcn_forward.3} parent=1 // pred_check_branch
      %18 = sbr.rel (0) target = $region5
    $region4: #{sgcn_forward.3} parent=1 // pred_region
      %s20 = ssub.s32 256, 256
      %21 = vsyncadd [#allocation3], %s20
      %s22 = sshll.u32 [#allocation2], 4
      %s23 = int_to_ptr.vmem [resolvable:$true] %s22
      %28 = dma.hbm_to_vmem [thread:$0]  %s0, 256, %s23, [#allocation3], 64, 64, 4
    $region5: #{sgcn_forward.3} parent=1 // pred_fallthru
      _
    // Predicated region
    $region6: #{sgcn_forward.3} parent=1 // pred_check
      _
    $region7: #{sgcn_forward.3} parent=1 // pred_check_branch
      %30 = sbr.rel (0) target = $region9
    $region8: #{sgcn_forward.3} parent=1 // pred_region
      %s32 = ssub.s32 256, 256
      %33 = vsyncadd [#allocation6], %s32
      %s34 = sshll.u32 [#allocation5], 4
      %s35 = int_to_ptr.vmem [resolvable:$true] %s34
      %40 = dma.hbm_to_vmem [thread:$0]  %s1, 256, %s35, [#allocation6], 64, 64, 4
    $region9: #{sgcn_forward.3} parent=1 // pred_fallthru
      _
    // Predicated region
    $region10: #{sgcn_forward.3} parent=1 // pred_check
      _
    $region11: #{sgcn_forward.3} parent=1 // pred_check_branch
      %42 = sbr.rel (0) target = $region13
    $region12: #{sgcn_forward.3} parent=1 // pred_region
      %s44 = ssub.s32 512, 512
      %45 = vsyncadd [#allocation6], %s44
      %s46 = sshll.u32 [#allocation7], 4
      %s47 = int_to_ptr.vmem [resolvable:$true] %s46
      %52 = dma.hbm_to_vmem [thread:$0]  %s2, 512, %s47, [#allocation6], 128, 128, 8
    $region13: #{sgcn_forward.3} parent=1 // pred_fallthru
      _
    // Predicated region
    $region14: #{sgcn_forward.3} parent=1 // pred_check
      _
    $region15: #{sgcn_forward.3} parent=1 // pred_check_branch
      %54 = sbr.rel (0) target = $region17
    $region16: #{sgcn_forward.3} parent=1 // pred_region
      %s56 = ssub.s32 512, 512
      %57 = vsyncadd [#allocation9], %s56
      %s58 = sshll.u32 [#allocation8], 4
      %s59 = int_to_ptr.vmem [resolvable:$true] %s58
      %64 = dma.hbm_to_vmem [thread:$0]  %s3, 512, %s59, [#allocation9], 128, 128, 8
    $region17: #{sgcn_forward.3} parent=1 // pred_fallthru
      _
    // Predicated region
    $region18: #{sgcn_forward.3} parent=1 // pred_check
      _
    $region19: #{sgcn_forward.3} parent=1 // pred_check_branch
      %66 = sbr.rel (0) target = $region21
    $region20: #{sgcn_forward.3} parent=1 // pred_region
      %s68 = ssub.s32 256, 256
      %69 = vsyncadd [#allocation9], %s68
      %s70 = sshll.u32 [#allocation10], 4
      %s71 = int_to_ptr.vmem [resolvable:$true] %s70
      %76 = dma.hbm_to_vmem [thread:$0]  %s4, 256, %s71, [#allocation9], 128, 128, 8
    $region21: #{sgcn_forward.3} parent=1 // pred_fallthru
      _
    // Predicated region
    $region22: #{sgcn_forward.3} parent=1 // pred_check
      _
    $region23: #{sgcn_forward.3} parent=1 // pred_check_branch
      %78 = sbr.rel (0) target = $region25
    $region24: #{sgcn_forward.3} parent=1 // pred_region
      %s80 = ssub.s32 256, 256
      %81 = vsyncadd [#allocation12], %s80
      %s82 = sshll.u32 [#allocation11], 4
      %s83 = int_to_ptr.vmem [resolvable:$true] %s82
      %88 = dma.hbm_to_vmem [thread:$0]  %s5, 256, %s83, [#allocation12], 128, 128, 8
    $region25: #{sgcn_forward.3} parent=1 // pred_fallthru
      _
    // Predicated region
    $region26: #{sgcn_forward.3} parent=1 // pred_check
      _
    $region27: #{sgcn_forward.3} parent=1 // pred_check_branch
      %90 = sbr.rel (0) target = $region29
    $region28: #{sgcn_forward.3} parent=1 // pred_region
      %s92 = ssub.s32 256, 256
      %93 = vsyncadd [#allocation12], %s92
      %s94 = sshll.u32 [#allocation13], 4
      %s95 = int_to_ptr.vmem [resolvable:$true] %s94
      %100 = dma.hbm_to_vmem [thread:$0]  %s6, 256, %s95, [#allocation12], 128, 128, 8
    $region29: #{sgcn_forward.3} parent=1 // pred_fallthru
      _
    // Predicated region
    $region30: #{sgcn_forward.3} parent=1 // pred_check
      _
    $region31: #{sgcn_forward.3} parent=1 // pred_check_branch
      %102 = sbr.rel (0) target = $region33
    $region32: #{sgcn_forward.3} parent=1 // pred_region
      %103 = dma.done [#allocation3], 256
    $region33: #{sgcn_forward.3} parent=1 // pred_fallthru
      _
    // Predicated region
    $region34: #{sgcn_forward.3} parent=1 // pred_check
      _
    $region35: #{sgcn_forward.3} parent=1 // pred_check_branch
      %105 = sbr.rel (0) target = $region37
    $region36: #{sgcn_forward.3} parent=1 // pred_region
      %106 = dma.done [#allocation6], 256
    $region37: #{sgcn_forward.3} parent=1 // pred_fallthru
      _
    // Predicated region
    $region38: #{sgcn_forward.3} parent=1 // pred_check
      _
    $region39: #{sgcn_forward.3} parent=1 // pred_check_branch
      %108 = sbr.rel (0) target = $region41
    $region40: #{sgcn_forward.3} parent=1 // pred_region
      %109 = dma.done [#allocation6], 512
    $region41: #{sgcn_forward.3} parent=1 // pred_fallthru
      _
    // Predicated region
    $region42: #{sgcn_forward.3} parent=1 // pred_check
      _
    $region43: #{sgcn_forward.3} parent=1 // pred_check_branch
      %111 = sbr.rel (0) target = $region45
    $region44: #{sgcn_forward.3} parent=1 // pred_region
      %112 = dma.done [#allocation9], 512
    $region45: #{sgcn_forward.3} parent=1 // pred_fallthru
      _
    // Predicated region
    $region46: #{sgcn_forward.3} parent=1 // pred_check
      _
    $region47: #{sgcn_forward.3} parent=1 // pred_check_branch
      %114 = sbr.rel (0) target = $region49
    $region48: #{sgcn_forward.3} parent=1 // pred_region
      %115 = dma.done [#allocation9], 256
    $region49: #{sgcn_forward.3} parent=1 // pred_fallthru
      _
    // Predicated region
    $region50: #{sgcn_forward.3} parent=1 // pred_check
      _
    $region51: #{sgcn_forward.3} parent=1 // pred_check_branch
      %117 = sbr.rel (0) target = $region53
    $region52: #{sgcn_forward.3} parent=1 // pred_region
      %118 = dma.done [#allocation12], 256
    $region53: #{sgcn_forward.3} parent=1 // pred_fallthru
      _
    // Predicated region
    $region54: #{sgcn_forward.3} parent=1 // pred_check
      _
    $region55: #{sgcn_forward.3} parent=1 // pred_check_branch
      %120 = sbr.rel (0) target = $region57
    $region56: #{sgcn_forward.3} parent=1 // pred_region
      %121 = dma.done [#allocation12], 256
    $region57: #{sgcn_forward.3} parent=1 // pred_fallthru
      _
    %v123 = vld [vmem:[#allocation7] sm:$0xff]
    %v124 = vld [vmem:[#allocation7 + $0x8] sm:$0xff]
    %v125 = vld [vmem:[#allocation7 + $0x10] sm:$0xff]
    %v126 = vld [vmem:[#allocation7 + $0x18] sm:$0xff]
    %v127 = vpack.c.bf16 %v124, %v123
    %v128 = vpack.c.bf16 %v126, %v125
    %v129 = vld [vmem:[#allocation2] sm:$0xf]
    %v130 = vld [vmem:[#allocation2 + $0x4] sm:$0xf]
    %v131 = vld [vmem:[#allocation2 + $0x8] sm:$0xf]
    %v132 = vld [vmem:[#allocation2 + $0xc] sm:$0xf]
    %v137 = vunpack.c.l.b16 %v129
    %v138 = vunpack.c.l.b16 %v130
    %v139 = vunpack.c.l.b16 %v131
    %v140 = vunpack.c.l.b16 %v132
    %v141 = vpack.c.b16 %v138, %v137
    %v142 = vpack.c.b16 %v140, %v139
    %vm143 = vcmask 261120
    %v145 = vsel %vm143, %v141, 0
    %v148 = vsel %vm143, %v142, 0
    %150 = vmatprep.subr.bf16.mxu0 0
    %151 = vmatpush1.bf16.msra.mxu0 %v127
    %152 = vmatprep.subr.bf16.mxu0 0
    %153 = vmatpush1.bf16.msra.mxu0 %v128
    %154 = vmatprep.subr.bf16.mxu0 0
    %155 = vmatpush1.bf16.msra.mxu0 0
    %156 = vmatprep.subr.bf16.mxu0 0
    %157 = vmatpush1.bf16.msra.mxu0 0
    %158 = vmatprep.subr.bf16.mxu0 0
    %159 = vmatpush1.bf16.msra.mxu0 0
    %160 = vmatprep.subr.bf16.mxu0 0
    %161 = vmatpush1.bf16.msra.mxu0 0
    %162 = vmatprep.subr.bf16.mxu0 0
    %163 = vmatpush1.bf16.msra.mxu0 0
    %164 = vmatprep.subr.bf16.mxu0 0
    %165 = vmatpush1.bf16.msra.mxu0 0
    %166 = vmatprep.subr.bf16.mxu0 0
    %167 = vmatpush1.bf16.msra.mxu0 0
    %168 = vmatprep.subr.bf16.mxu0 0
    %169 = vmatpush1.bf16.msra.mxu0 0
    %170 = vmatprep.subr.bf16.mxu0 0
    %171 = vmatpush1.bf16.msra.mxu0 0
    %172 = vmatprep.subr.bf16.mxu0 0
    %173 = vmatpush1.bf16.msra.mxu0 0
    %174 = vmatprep.subr.bf16.mxu0 0
    %175 = vmatpush1.bf16.msra.mxu0 0
    %176 = vmatprep.subr.bf16.mxu0 0
    %177 = vmatpush1.bf16.msra.mxu0 0
    %178 = vmatprep.subr.bf16.mxu0 0
    %179 = vmatpush1.bf16.msra.mxu0 0
    %180 = vmatprep.subr.bf16.mxu0 0
    %181 = vmatpush1.bf16.msra.mxu0 0
    %182 = vmatprep.mubr.bf16.mxu0 0
    %183 = vmatmul.mubr.bf16.gmra.mrb[0].mxu0 %v145
    %v184 = vpop.f32.mrb[0].mxu0
    %v185 = vadd.f32 0.0, %v184
    %v186 = vpop.f32.mrb[0].mxu0
    %v187 = vpop.f32.mrb[0].mxu0
    %v188 = vadd.f32 0.0, %v187
    %v189 = vpop.f32.mrb[0].mxu0
    %190 = vmatprep.mubr.bf16.mxu0 0
    %191 = vmatmul.mubr.bf16.gmra.mrb[0].mxu0 %v148
    %v192 = vpop.f32.mrb[0].mxu0
    %v193 = vadd.f32 0.0, %v192
    %v194 = vpop.f32.mrb[0].mxu0
    %v195 = vpop.f32.mrb[0].mxu0
    %v196 = vadd.f32 0.0, %v195
    %v197 = vpop.f32.mrb[0].mxu0
    %198 = vdwg.mxu0
    %v199 = vld [vmem:[#allocation5] sm:$0xf]
    %v200 = vld [vmem:[#allocation5 + $0x4] sm:$0xf]
    %v201 = vld [vmem:[#allocation5 + $0x8] sm:$0xf]
    %v202 = vld [vmem:[#allocation5 + $0xc] sm:$0xf]
    %v207 = vunpack.c.l.b16 %v199
    %v208 = vunpack.c.l.b16 %v200
    %v209 = vunpack.c.l.b16 %v201
    %v210 = vunpack.c.l.b16 %v202
    %v211 = vpack.c.b16 %v208, %v207
    %v212 = vpack.c.b16 %v210, %v209
    %v214 = vsel %vm143, %v211, 0
    %v217 = vsel %vm143, %v212, 0
    %219 = vmatprep.subr.bf16.mxu0 0
    %220 = vmatpush1.bf16.msra.mxu0 %v127
    %221 = vmatprep.subr.bf16.mxu0 0
    %222 = vmatpush1.bf16.msra.mxu0 %v128
    %223 = vmatprep.subr.bf16.mxu0 0
    %224 = vmatpush1.bf16.msra.mxu0 0
    %225 = vmatprep.subr.bf16.mxu0 0
    %226 = vmatpush1.bf16.msra.mxu0 0
    %227 = vmatprep.subr.bf16.mxu0 0
    %228 = vmatpush1.bf16.msra.mxu0 0
    %229 = vmatprep.subr.bf16.mxu0 0
    %230 = vmatpush1.bf16.msra.mxu0 0
    %231 = vmatprep.subr.bf16.mxu0 0
    %232 = vmatpush1.bf16.msra.mxu0 0
    %233 = vmatprep.subr.bf16.mxu0 0
    %234 = vmatpush1.bf16.msra.mxu0 0
    %235 = vmatprep.subr.bf16.mxu0 0
    %236 = vmatpush1.bf16.msra.mxu0 0
    %237 = vmatprep.subr.bf16.mxu0 0
    %238 = vmatpush1.bf16.msra.mxu0 0
    %239 = vmatprep.subr.bf16.mxu0 0
    %240 = vmatpush1.bf16.msra.mxu0 0
    %241 = vmatprep.subr.bf16.mxu0 0
    %242 = vmatpush1.bf16.msra.mxu0 0
    %243 = vmatprep.subr.bf16.mxu0 0
    %244 = vmatpush1.bf16.msra.mxu0 0
    %245 = vmatprep.subr.bf16.mxu0 0
    %246 = vmatpush1.bf16.msra.mxu0 0
    %247 = vmatprep.subr.bf16.mxu0 0
    %248 = vmatpush1.bf16.msra.mxu0 0
    %249 = vmatprep.subr.bf16.mxu0 0
    %250 = vmatpush1.bf16.msra.mxu0 0
    %251 = vmatprep.mubr.bf16.mxu0 0
    %252 = vmatmul.mubr.bf16.gmra.mrb[0].mxu0 %v214
    %v253 = vpop.f32.mrb[0].mxu0
    %v254 = vadd.f32 0.0, %v253
    %v255 = vpop.f32.mrb[0].mxu0
    %v256 = vpop.f32.mrb[0].mxu0
    %v257 = vadd.f32 0.0, %v256
    %v258 = vpop.f32.mrb[0].mxu0
    %259 = vmatprep.mubr.bf16.mxu0 0
    %260 = vmatmul.mubr.bf16.gmra.mrb[0].mxu0 %v217
    %v261 = vpop.f32.mrb[0].mxu0
    %v262 = vadd.f32 0.0, %v261
    %v263 = vpop.f32.mrb[0].mxu0
    %v264 = vpop.f32.mrb[0].mxu0
    %v265 = vadd.f32 0.0, %v264
    %v266 = vpop.f32.mrb[0].mxu0
    %267 = vdwg.mxu0
    %v268 = vld [vmem:[#allocation10] sm:$0xff]
    %v269 = vld [vmem:[#allocation10 + $0x8] sm:$0xff]
    %v270 = vld [vmem:[#allocation11] sm:$0xff]
    %v271 = vld [vmem:[#allocation11 + $0x8] sm:$0xff]
    %vm272 = vcmask 130048
    %v274 = vsel %vm272, %v254, 0
    %v277 = vsel %vm272, %v257, 0
    %v280 = vsel %vm272, %v262, 0
    %v283 = vsel %vm272, %v265, 0
    %285 = vmatprep.subr.mxu0 0.0
    %286 = vmatpush1.msra.mxu0 %v270
    %287 = vmatprep.subr.mxu0 0.0
    %288 = vmatpush1.msra.mxu0 %v271
    %289 = vmatprep.subr.mxu0 0.0
    %290 = vmatpush1.msra.mxu0 0.0
    %291 = vmatprep.subr.mxu0 0.0
    %292 = vmatpush1.msra.mxu0 0.0
    %293 = vmatprep.subr.mxu0 0.0
    %294 = vmatpush1.msra.mxu0 0.0
    %295 = vmatprep.subr.mxu0 0.0
    %296 = vmatpush1.msra.mxu0 0.0
    %297 = vmatprep.subr.mxu0 0.0
    %298 = vmatpush1.msra.mxu0 0.0
    %299 = vmatprep.subr.mxu0 0.0
    %300 = vmatpush1.msra.mxu0 0.0
    %301 = vmatprep.subr.mxu0 0.0
    %302 = vmatpush1.msra.mxu0 0.0
    %303 = vmatprep.subr.mxu0 0.0
    %304 = vmatpush1.msra.mxu0 0.0
    %305 = vmatprep.subr.mxu0 0.0
    %306 = vmatpush1.msra.mxu0 0.0
    %307 = vmatprep.subr.mxu0 0.0
    %308 = vmatpush1.msra.mxu0 0.0
    %309 = vmatprep.subr.mxu0 0.0
    %310 = vmatpush1.msra.mxu0 0.0
    %311 = vmatprep.subr.mxu0 0.0
    %312 = vmatpush1.msra.mxu0 0.0
    %313 = vmatprep.subr.mxu0 0.0
    %314 = vmatpush1.msra.mxu0 0.0
    %315 = vmatprep.subr.mxu0 0.0
    %316 = vmatpush1.msra.mxu0 0.0
    %317 = vmatprep.subr.mxu0 0.0
    %318 = vmatpush1.msra.mxu0 0.0
    %319 = vmatprep.subr.mxu0 0.0
    %320 = vmatpush1.msra.mxu0 0.0
    %321 = vmatprep.subr.mxu0 0.0
    %322 = vmatpush1.msra.mxu0 0.0
    %323 = vmatprep.subr.mxu0 0.0
    %324 = vmatpush1.msra.mxu0 0.0
    %325 = vmatprep.subr.mxu0 0.0
    %326 = vmatpush1.msra.mxu0 0.0
    %327 = vmatprep.subr.mxu0 0.0
    %328 = vmatpush1.msra.mxu0 0.0
    %329 = vmatprep.subr.mxu0 0.0
    %330 = vmatpush1.msra.mxu0 0.0
    %331 = vmatprep.subr.mxu0 0.0
    %332 = vmatpush1.msra.mxu0 0.0
    %333 = vmatprep.subr.mxu0 0.0
    %334 = vmatpush1.msra.mxu0 0.0
    %335 = vmatprep.subr.mxu0 0.0
    %336 = vmatpush1.msra.mxu0 0.0
    %337 = vmatprep.subr.mxu0 0.0
    %338 = vmatpush1.msra.mxu0 0.0
    %339 = vmatprep.subr.mxu0 0.0
    %340 = vmatpush1.msra.mxu0 0.0
    %341 = vmatprep.subr.mxu0 0.0
    %342 = vmatpush1.msra.mxu0 0.0
    %343 = vmatprep.subr.mxu0 0.0
    %344 = vmatpush1.msra.mxu0 0.0
    %345 = vmatprep.subr.mxu0 0.0
    %346 = vmatpush1.msra.mxu0 0.0
    %347 = vmatprep.subr.mxu0 0.0
    %348 = vmatpush1.msra.mxu0 0.0
    %349 = vmatprep.mubr.f32.mxu0 0.0
    %350 = vmatmul.mubr.f32.gmra.mrb[0].mxu0 %v274
    %v351 = vpop.f32.mrb[0].mxu0
    %v352 = vadd.f32 0.0, %v351
    %v353 = vpop.f32.mrb[0].mxu0
    %354 = vmatprep.mubr.f32.mxu0 0.0
    %355 = vmatmul.mubr.f32.gmra.mrb[0].mxu0 %v277
    %v356 = vpop.f32.mrb[0].mxu0
    %v357 = vadd.f32 0.0, %v356
    %v358 = vpop.f32.mrb[0].mxu0
    %359 = vmatprep.mubr.f32.mxu0 0.0
    %360 = vmatmul.mubr.f32.gmra.mrb[0].mxu0 %v280
    %v361 = vpop.f32.mrb[0].mxu0
    %v362 = vadd.f32 0.0, %v361
    %v363 = vpop.f32.mrb[0].mxu0
    %364 = vmatprep.mubr.f32.mxu0 0.0
    %365 = vmatmul.mubr.f32.gmra.mrb[0].mxu0 %v283
    %v366 = vpop.f32.mrb[0].mxu0
    %v367 = vadd.f32 0.0, %v366
    %v368 = vpop.f32.mrb[0].mxu0
    %369 = vdwg.mxu0
    %v371 = vsel %vm272, %v185, 0
    %v374 = vsel %vm272, %v188, 0
    %v377 = vsel %vm272, %v193, 0
    %v380 = vsel %vm272, %v196, 0
    %382 = vmatprep.subr.mxu0 0.0
    %383 = vmatpush1.msra.mxu0 %v268
    %384 = vmatprep.subr.mxu0 0.0
    %385 = vmatpush1.msra.mxu0 %v269
    %386 = vmatprep.subr.mxu0 0.0
    %387 = vmatpush1.msra.mxu0 0.0
    %388 = vmatprep.subr.mxu0 0.0
    %389 = vmatpush1.msra.mxu0 0.0
    %390 = vmatprep.subr.mxu0 0.0
    %391 = vmatpush1.msra.mxu0 0.0
    %392 = vmatprep.subr.mxu0 0.0
    %393 = vmatpush1.msra.mxu0 0.0
    %394 = vmatprep.subr.mxu0 0.0
    %395 = vmatpush1.msra.mxu0 0.0
    %396 = vmatprep.subr.mxu0 0.0
    %397 = vmatpush1.msra.mxu0 0.0
    %398 = vmatprep.subr.mxu0 0.0
    %399 = vmatpush1.msra.mxu0 0.0
    %400 = vmatprep.subr.mxu0 0.0
    %401 = vmatpush1.msra.mxu0 0.0
    %402 = vmatprep.subr.mxu0 0.0
    %403 = vmatpush1.msra.mxu0 0.0
    %404 = vmatprep.subr.mxu0 0.0
    %405 = vmatpush1.msra.mxu0 0.0
    %406 = vmatprep.subr.mxu0 0.0
    %407 = vmatpush1.msra.mxu0 0.0
    %408 = vmatprep.subr.mxu0 0.0
    %409 = vmatpush1.msra.mxu0 0.0
    %410 = vmatprep.subr.mxu0 0.0
    %411 = vmatpush1.msra.mxu0 0.0
    %412 = vmatprep.subr.mxu0 0.0
    %413 = vmatpush1.msra.mxu0 0.0
    %414 = vmatprep.subr.mxu0 0.0
    %415 = vmatpush1.msra.mxu0 0.0
    %416 = vmatprep.subr.mxu0 0.0
    %417 = vmatpush1.msra.mxu0 0.0
    %418 = vmatprep.subr.mxu0 0.0
    %419 = vmatpush1.msra.mxu0 0.0
    %420 = vmatprep.subr.mxu0 0.0
    %421 = vmatpush1.msra.mxu0 0.0
    %422 = vmatprep.subr.mxu0 0.0
    %423 = vmatpush1.msra.mxu0 0.0
    %424 = vmatprep.subr.mxu0 0.0
    %425 = vmatpush1.msra.mxu0 0.0
    %426 = vmatprep.subr.mxu0 0.0
    %427 = vmatpush1.msra.mxu0 0.0
    %428 = vmatprep.subr.mxu0 0.0
    %429 = vmatpush1.msra.mxu0 0.0
    %430 = vmatprep.subr.mxu0 0.0
    %431 = vmatpush1.msra.mxu0 0.0
    %432 = vmatprep.subr.mxu0 0.0
    %433 = vmatpush1.msra.mxu0 0.0
    %434 = vmatprep.subr.mxu0 0.0
    %435 = vmatpush1.msra.mxu0 0.0
    %436 = vmatprep.subr.mxu0 0.0
    %437 = vmatpush1.msra.mxu0 0.0
    %438 = vmatprep.subr.mxu0 0.0
    %439 = vmatpush1.msra.mxu0 0.0
    %440 = vmatprep.subr.mxu0 0.0
    %441 = vmatpush1.msra.mxu0 0.0
    %442 = vmatprep.subr.mxu0 0.0
    %443 = vmatpush1.msra.mxu0 0.0
    %444 = vmatprep.subr.mxu0 0.0
    %445 = vmatpush1.msra.mxu0 0.0
    %446 = vmatprep.mubr.f32.mxu0 0.0
    %447 = vmatmul.mubr.f32.gmra.mrb[0].mxu0 %v371
    %v448 = vpop.f32.mrb[0].mxu0
    %v449 = vadd.f32 %v352, %v448
    %v450 = vpop.f32.mrb[0].mxu0
    %451 = vmatprep.mubr.f32.mxu0 0.0
    %452 = vmatmul.mubr.f32.gmra.mrb[0].mxu0 %v374
    %v453 = vpop.f32.mrb[0].mxu0
    %v454 = vadd.f32 %v357, %v453
    %v455 = vpop.f32.mrb[0].mxu0
    %456 = vmatprep.mubr.f32.mxu0 0.0
    %457 = vmatmul.mubr.f32.gmra.mrb[0].mxu0 %v377
    %v458 = vpop.f32.mrb[0].mxu0
    %v459 = vadd.f32 %v362, %v458
    %v460 = vpop.f32.mrb[0].mxu0
    %461 = vmatprep.mubr.f32.mxu0 0.0
    %462 = vmatmul.mubr.f32.gmra.mrb[0].mxu0 %v380
    %v463 = vpop.f32.mrb[0].mxu0
    %v464 = vadd.f32 %v367, %v463
    %v465 = vpop.f32.mrb[0].mxu0
    %466 = vdwg.mxu0
    %v467 = vld [vmem:[#allocation8] sm:$0xff]
    %v468 = vld [vmem:[#allocation8 + $0x8] sm:$0xff]
    %v469 = vld [vmem:[#allocation8 + $0x10] sm:$0xff]
    %v470 = vld [vmem:[#allocation8 + $0x18] sm:$0xff]
    %v471 = vld [vmem:[#allocation13] sm:$0xff]
    %v472 = vld [vmem:[#allocation13 + $0x8] sm:$0xff]
    %v474 = vsel %vm272, %v467, 0
    %v477 = vsel %vm272, %v468, 0
    %v480 = vsel %vm272, %v469, 0
    %v483 = vsel %vm272, %v470, 0
    %485 = vmatprep.subr.mxu0 0.0
    %486 = vmatpush1.msra.mxu0 %v471
    %487 = vmatprep.subr.mxu0 0.0
    %488 = vmatpush1.msra.mxu0 %v472
    %489 = vmatprep.subr.mxu0 0.0
    %490 = vmatpush1.msra.mxu0 0.0
    %491 = vmatprep.subr.mxu0 0.0
    %492 = vmatpush1.msra.mxu0 0.0
    %493 = vmatprep.subr.mxu0 0.0
    %494 = vmatpush1.msra.mxu0 0.0
    %495 = vmatprep.subr.mxu0 0.0
    %496 = vmatpush1.msra.mxu0 0.0
    %497 = vmatprep.subr.mxu0 0.0
    %498 = vmatpush1.msra.mxu0 0.0
    %499 = vmatprep.subr.mxu0 0.0
    %500 = vmatpush1.msra.mxu0 0.0
    %501 = vmatprep.subr.mxu0 0.0
    %502 = vmatpush1.msra.mxu0 0.0
    %503 = vmatprep.subr.mxu0 0.0
    %504 = vmatpush1.msra.mxu0 0.0
    %505 = vmatprep.subr.mxu0 0.0
    %506 = vmatpush1.msra.mxu0 0.0
    %507 = vmatprep.subr.mxu0 0.0
    %508 = vmatpush1.msra.mxu0 0.0
    %509 = vmatprep.subr.mxu0 0.0
    %510 = vmatpush1.msra.mxu0 0.0
    %511 = vmatprep.subr.mxu0 0.0
    %512 = vmatpush1.msra.mxu0 0.0
    %513 = vmatprep.subr.mxu0 0.0
    %514 = vmatpush1.msra.mxu0 0.0
    %515 = vmatprep.subr.mxu0 0.0
    %516 = vmatpush1.msra.mxu0 0.0
    %517 = vmatprep.subr.mxu0 0.0
    %518 = vmatpush1.msra.mxu0 0.0
    %519 = vmatprep.subr.mxu0 0.0
    %520 = vmatpush1.msra.mxu0 0.0
    %521 = vmatprep.subr.mxu0 0.0
    %522 = vmatpush1.msra.mxu0 0.0
    %523 = vmatprep.subr.mxu0 0.0
    %524 = vmatpush1.msra.mxu0 0.0
    %525 = vmatprep.subr.mxu0 0.0
    %526 = vmatpush1.msra.mxu0 0.0
    %527 = vmatprep.subr.mxu0 0.0
    %528 = vmatpush1.msra.mxu0 0.0
    %529 = vmatprep.subr.mxu0 0.0
    %530 = vmatpush1.msra.mxu0 0.0
    %531 = vmatprep.subr.mxu0 0.0
    %532 = vmatpush1.msra.mxu0 0.0
    %533 = vmatprep.subr.mxu0 0.0
    %534 = vmatpush1.msra.mxu0 0.0
    %535 = vmatprep.subr.mxu0 0.0
    %536 = vmatpush1.msra.mxu0 0.0
    %537 = vmatprep.subr.mxu0 0.0
    %538 = vmatpush1.msra.mxu0 0.0
    %539 = vmatprep.subr.mxu0 0.0
    %540 = vmatpush1.msra.mxu0 0.0
    %541 = vmatprep.subr.mxu0 0.0
    %542 = vmatpush1.msra.mxu0 0.0
    %543 = vmatprep.subr.mxu0 0.0
    %544 = vmatpush1.msra.mxu0 0.0
    %545 = vmatprep.subr.mxu0 0.0
    %546 = vmatpush1.msra.mxu0 0.0
    %547 = vmatprep.subr.mxu0 0.0
    %548 = vmatpush1.msra.mxu0 0.0
    %549 = vmatprep.mubr.f32.mxu0 0.0
    %550 = vmatmul.mubr.f32.gmra.mrb[0].mxu0 %v474
    %v551 = vpop.f32.mrb[0].mxu0
    %v552 = vadd.f32 0.0, %v551
    %v553 = vpop.f32.mrb[0].mxu0
    %554 = vmatprep.mubr.f32.mxu0 0.0
    %555 = vmatmul.mubr.f32.gmra.mrb[0].mxu0 %v477
    %v556 = vpop.f32.mrb[0].mxu0
    %v557 = vadd.f32 0.0, %v556
    %v558 = vpop.f32.mrb[0].mxu0
    %559 = vmatprep.mubr.f32.mxu0 0.0
    %560 = vmatmul.mubr.f32.gmra.mrb[0].mxu0 %v480
    %v561 = vpop.f32.mrb[0].mxu0
    %v562 = vadd.f32 0.0, %v561
    %v563 = vpop.f32.mrb[0].mxu0
    %564 = vmatprep.mubr.f32.mxu0 0.0
    %565 = vmatmul.mubr.f32.gmra.mrb[0].mxu0 %v483
    %v566 = vpop.f32.mrb[0].mxu0
    %v567 = vadd.f32 0.0, %v566
    %v568 = vpop.f32.mrb[0].mxu0
    %569 = vdwg.mxu0
    %v570 = vadd.f32 %v449, %v552
    %v571 = vadd.f32 %v454, %v557
    %v572 = vadd.f32 %v459, %v562
    %v573 = vadd.f32 %v464, %v567
    %v574 = vtanh.pop %v570
    %v575 = vtanh.pop %v571
    %v576 = vtanh.pop %v572
    %v577 = vtanh.pop %v573
    %vm578 = vcmask 523264
    %579 = vst.msk [vmem:[#allocation14] sm:$0xff] %vm578, %v574
    %580 = vst.msk [vmem:[#allocation14 + $0x8] sm:$0xff] %vm578, %v575
    %581 = vst.msk [vmem:[#allocation14 + $0x10] sm:$0xff] %vm578, %v576
    %582 = vst.msk [vmem:[#allocation14 + $0x18] sm:$0xff] %vm578, %v577
    // Predicated region
    $region58: #{sgcn_forward.3} parent=1 // pred_check
      _
    $region59: #{sgcn_forward.3} parent=1 // pred_check_branch
      %584 = sbr.rel (0) target = $region61
    $region60: #{sgcn_forward.3} parent=1 // pred_region
      %s586 = ssub.s32 512, 512
      %587 = vsyncadd [#allocation4], %s586
      %s588 = sshll.u32 [#allocation14], 4
      %s589 = int_to_ptr.vmem [resolvable:$true] %s588
      %594 = dma.vmem_to_hbm [thread:$0]  %s589, 512, %s7, [#allocation4], 128, 128, 8
    $region61: #{sgcn_forward.3} parent=1 // pred_fallthru
      _
    // Predicated region
    $region62: #{sgcn_forward.3} parent=1 // pred_check
      _
    $region63: #{sgcn_forward.3} parent=1 // pred_check_branch
      %596 = sbr.rel (0) target = $region65
    $region64: #{sgcn_forward.3} parent=1 // pred_region
      %597 = dma.done [#allocation4], 512
    $region65: #{sgcn_forward.3} parent=1 // pred_fallthru
      _
    %598 = vsyncpa [#allocation3], 1
    %599 = vsyncpa [#allocation6], 1
    %600 = vsyncpa [#allocation9], 1
    %601 = vsyncpa [#allocation12], 1
    %602 = vsyncpa [#allocation4], 1

// kernel: sgcn_forward.4
$region0: #{sgcn_forward.4}
  #allocation0 [shape = 'u32[]', space=smem, size = 0x4, offset = 0x4, fixed_abs, tag = 'smem constant byte address 0x4 - core index']
  #allocation1 [shape = 'u32[144,128]{1,0:T(1,128)}', space=vmem, size = 0x12000, scoped, tag = 'internal scratch']
  %s0 = inlined_call_operand.hbm [shape: bf16[32,32], index: 0, kind: input, shape index: {}]
  %s1 = inlined_call_operand.hbm [shape: bf16[32,32], index: 1, kind: input, shape index: {}]
  %s2 = inlined_call_operand.hbm [shape: f32[32,64], index: 2, kind: input, shape index: {}, may-alias: {2,3}]
  %s3 = inlined_call_operand.hbm [shape: f32[32,64], index: 3, kind: input, shape index: {}, may-alias: {2,3}]
  %s4 = inlined_call_operand.hbm [shape: f32[64,64], index: 4, kind: input, shape index: {}]
  %s5 = inlined_call_operand.hbm [shape: f32[64,64], index: 5, kind: input, shape index: {}]
  %s6 = inlined_call_operand.hbm [shape: f32[64,64], index: 6, kind: input, shape index: {}]
  %s7 = inlined_call_operand.hbm [shape: f32[32,64], index: 7, kind: output, shape index: {}]
  %s8 = sld [smem:[#allocation0]]
  $region66: #{sgcn_forward.4} parent=0
    _
  %s10 = ssub.s32 1, %s8
  %s11 = scalar_select 0, %s10, %s8
  $region1: #{sgcn_forward.4} parent=0
    #allocation2 [shape = 'u8[8192]{0}', space=vmem, size = 0x2000, scoped, tag = 'input window, operand 0, single buffered']
    #allocation3 [shape = 's32[1]{0}', space=sflag, size = 0x4, scoped, tag = 'scoped memory for sgcn_forward.4']
    #allocation4 [shape = 's32[1]{0}', space=sflag, size = 0x4, scoped, tag = 'scoped memory for sgcn_forward.4']
    #allocation5 [shape = 'u8[8192]{0}', space=vmem, size = 0x2000, scoped, tag = 'input window, operand 1, single buffered']
    #allocation6 [shape = 's32[1]{0}', space=sflag, size = 0x4, scoped, tag = 'scoped memory for sgcn_forward.4']
    #allocation7 [shape = 'u8[16384]{0}', space=vmem, size = 0x4000, scoped, tag = 'input window, operand 2, single buffered']
    #allocation8 [shape = 'u8[16384]{0}', space=vmem, size = 0x4000, scoped, tag = 'input window, operand 3, single buffered']
    #allocation9 [shape = 's32[1]{0}', space=sflag, size = 0x4, scoped, tag = 'scoped memory for sgcn_forward.4']
    #allocation10 [shape = 'u8[32768]{0}', space=vmem, size = 0x8000, scoped, tag = 'input window, operand 4, single buffered']
    #allocation11 [shape = 'u8[32768]{0}', space=vmem, size = 0x8000, scoped, tag = 'input window, operand 5, single buffered']
    #allocation12 [shape = 's32[1]{0}', space=sflag, size = 0x4, scoped, tag = 'scoped memory for sgcn_forward.4']
    #allocation13 [shape = 'u8[32768]{0}', space=vmem, size = 0x8000, scoped, tag = 'input window, operand 6, single buffered']
    #allocation14 [shape = 'u8[16384]{0}', space=vmem, size = 0x4000, scoped, tag = 'output window, operand 0, single buffered']
    %12 = vsyncpa [#allocation3], 0
    %13 = vsyncpa [#allocation6], 0
    %14 = vsyncpa [#allocation9], 0
    %15 = vsyncpa [#allocation12], 0
    %16 = vsyncpa [#allocation4], 0
    // Predicated region
    $region2: #{sgcn_forward.4} parent=1 // pred_check
      _
    $region3: #{sgcn_forward.4} parent=1 // pred_check_branch
      %18 = sbr.rel (0) target = $region5
    $region4: #{sgcn_forward.4} parent=1 // pred_region
      %s20 = ssub.s32 256, 256
      %21 = vsyncadd [#allocation3], %s20
      %s22 = sshll.u32 [#allocation2], 4
      %s23 = int_to_ptr.vmem [resolvable:$true] %s22
      %28 = dma.hbm_to_vmem [thread:$0]  %s0, 256, %s23, [#allocation3], 64, 64, 4
    $region5: #{sgcn_forward.4} parent=1 // pred_fallthru
      _
    // Predicated region
    $region6: #{sgcn_forward.4} parent=1 // pred_check
      _
    $region7: #{sgcn_forward.4} parent=1 // pred_check_branch
      %30 = sbr.rel (0) target = $region9
    $region8: #{sgcn_forward.4} parent=1 // pred_region
      %s32 = ssub.s32 256, 256
      %33 = vsyncadd [#allocation6], %s32
      %s34 = sshll.u32 [#allocation5], 4
      %s35 = int_to_ptr.vmem [resolvable:$true] %s34
      %40 = dma.hbm_to_vmem [thread:$0]  %s1, 256, %s35, [#allocation6], 64, 64, 4
    $region9: #{sgcn_forward.4} parent=1 // pred_fallthru
      _
    // Predicated region
    $region10: #{sgcn_forward.4} parent=1 // pred_check
      _
    $region11: #{sgcn_forward.4} parent=1 // pred_check_branch
      %42 = sbr.rel (0) target = $region13
    $region12: #{sgcn_forward.4} parent=1 // pred_region
      %s44 = ssub.s32 512, 512
      %45 = vsyncadd [#allocation6], %s44
      %s46 = sshll.u32 [#allocation7], 4
      %s47 = int_to_ptr.vmem [resolvable:$true] %s46
      %52 = dma.hbm_to_vmem [thread:$0]  %s2, 512, %s47, [#allocation6], 128, 128, 8
    $region13: #{sgcn_forward.4} parent=1 // pred_fallthru
      _
    // Predicated region
    $region14: #{sgcn_forward.4} parent=1 // pred_check
      _
    $region15: #{sgcn_forward.4} parent=1 // pred_check_branch
      %54 = sbr.rel (0) target = $region17
    $region16: #{sgcn_forward.4} parent=1 // pred_region
      %s56 = ssub.s32 512, 512
      %57 = vsyncadd [#allocation9], %s56
      %s58 = sshll.u32 [#allocation8], 4
      %s59 = int_to_ptr.vmem [resolvable:$true] %s58
      %64 = dma.hbm_to_vmem [thread:$0]  %s3, 512, %s59, [#allocation9], 128, 128, 8
    $region17: #{sgcn_forward.4} parent=1 // pred_fallthru
      _
    // Predicated region
    $region18: #{sgcn_forward.4} parent=1 // pred_check
      _
    $region19: #{sgcn_forward.4} parent=1 // pred_check_branch
      %66 = sbr.rel (0) target = $region21
    $region20: #{sgcn_forward.4} parent=1 // pred_region
      %s68 = ssub.s32 1024, 1024
      %69 = vsyncadd [#allocation9], %s68
      %s70 = sshll.u32 [#allocation10], 4
      %s71 = int_to_ptr.vmem [resolvable:$true] %s70
      %76 = dma.hbm_to_vmem [thread:$0]  %s4, 1024, %s71, [#allocation9], 128, 128, 8
    $region21: #{sgcn_forward.4} parent=1 // pred_fallthru
      _
    // Predicated region
    $region22: #{sgcn_forward.4} parent=1 // pred_check
      _
    $region23: #{sgcn_forward.4} parent=1 // pred_check_branch
      %78 = sbr.rel (0) target = $region25
    $region24: #{sgcn_forward.4} parent=1 // pred_region
      %s80 = ssub.s32 1024, 1024
      %81 = vsyncadd [#allocation12], %s80
      %s82 = sshll.u32 [#allocation11], 4
      %s83 = int_to_ptr.vmem [resolvable:$true] %s82
      %88 = dma.hbm_to_vmem [thread:$0]  %s5, 1024, %s83, [#allocation12], 128, 128, 8
    $region25: #{sgcn_forward.4} parent=1 // pred_fallthru
      _
    // Predicated region
    $region26: #{sgcn_forward.4} parent=1 // pred_check
      _
    $region27: #{sgcn_forward.4} parent=1 // pred_check_branch
      %90 = sbr.rel (0) target = $region29
    $region28: #{sgcn_forward.4} parent=1 // pred_region
      %s92 = ssub.s32 1024, 1024
      %93 = vsyncadd [#allocation12], %s92
      %s94 = sshll.u32 [#allocation13], 4
      %s95 = int_to_ptr.vmem [resolvable:$true] %s94
      %100 = dma.hbm_to_vmem [thread:$0]  %s6, 1024, %s95, [#allocation12], 128, 128, 8
    $region29: #{sgcn_forward.4} parent=1 // pred_fallthru
      _
    // Predicated region
    $region30: #{sgcn_forward.4} parent=1 // pred_check
      _
    $region31: #{sgcn_forward.4} parent=1 // pred_check_branch
      %102 = sbr.rel (0) target = $region33
    $region32: #{sgcn_forward.4} parent=1 // pred_region
      %103 = dma.done [#allocation3], 256
    $region33: #{sgcn_forward.4} parent=1 // pred_fallthru
      _
    // Predicated region
    $region34: #{sgcn_forward.4} parent=1 // pred_check
      _
    $region35: #{sgcn_forward.4} parent=1 // pred_check_branch
      %105 = sbr.rel (0) target = $region37
    $region36: #{sgcn_forward.4} parent=1 // pred_region
      %106 = dma.done [#allocation6], 256
    $region37: #{sgcn_forward.4} parent=1 // pred_fallthru
      _
    // Predicated region
    $region38: #{sgcn_forward.4} parent=1 // pred_check
      _
    $region39: #{sgcn_forward.4} parent=1 // pred_check_branch
      %108 = sbr.rel (0) target = $region41
    $region40: #{sgcn_forward.4} parent=1 // pred_region
      %109 = dma.done [#allocation6], 512
    $region41: #{sgcn_forward.4} parent=1 // pred_fallthru
      _
    // Predicated region
    $region42: #{sgcn_forward.4} parent=1 // pred_check
      _
    $region43: #{sgcn_forward.4} parent=1 // pred_check_branch
      %111 = sbr.rel (0) target = $region45
    $region44: #{sgcn_forward.4} parent=1 // pred_region
      %112 = dma.done [#allocation9], 512
    $region45: #{sgcn_forward.4} parent=1 // pred_fallthru
      _
    // Predicated region
    $region46: #{sgcn_forward.4} parent=1 // pred_check
      _
    $region47: #{sgcn_forward.4} parent=1 // pred_check_branch
      %114 = sbr.rel (0) target = $region49
    $region48: #{sgcn_forward.4} parent=1 // pred_region
      %115 = dma.done [#allocation9], 1024
    $region49: #{sgcn_forward.4} parent=1 // pred_fallthru
      _
    // Predicated region
    $region50: #{sgcn_forward.4} parent=1 // pred_check
      _
    $region51: #{sgcn_forward.4} parent=1 // pred_check_branch
      %117 = sbr.rel (0) target = $region53
    $region52: #{sgcn_forward.4} parent=1 // pred_region
      %118 = dma.done [#allocation12], 1024
    $region53: #{sgcn_forward.4} parent=1 // pred_fallthru
      _
    // Predicated region
    $region54: #{sgcn_forward.4} parent=1 // pred_check
      _
    $region55: #{sgcn_forward.4} parent=1 // pred_check_branch
      %120 = sbr.rel (0) target = $region57
    $region56: #{sgcn_forward.4} parent=1 // pred_region
      %121 = dma.done [#allocation12], 1024
    $region57: #{sgcn_forward.4} parent=1 // pred_fallthru
      _
    %v123 = vld [vmem:[#allocation7] sm:$0xff]
    %v124 = vld [vmem:[#allocation7 + $0x8] sm:$0xff]
    %v125 = vld [vmem:[#allocation7 + $0x10] sm:$0xff]
    %v126 = vld [vmem:[#allocation7 + $0x18] sm:$0xff]
    %v127 = vpack.c.bf16 %v124, %v123
    %v128 = vpack.c.bf16 %v126, %v125
    %v129 = vld [vmem:[#allocation2] sm:$0xf]
    %v130 = vld [vmem:[#allocation2 + $0x4] sm:$0xf]
    %v131 = vld [vmem:[#allocation2 + $0x8] sm:$0xf]
    %v132 = vld [vmem:[#allocation2 + $0xc] sm:$0xf]
    %v137 = vunpack.c.l.b16 %v129
    %v138 = vunpack.c.l.b16 %v130
    %v139 = vunpack.c.l.b16 %v131
    %v140 = vunpack.c.l.b16 %v132
    %v141 = vpack.c.b16 %v138, %v137
    %v142 = vpack.c.b16 %v140, %v139
    %vm143 = vcmask 261120
    %v145 = vsel %vm143, %v141, 0
    %v148 = vsel %vm143, %v142, 0
    %150 = vmatprep.subr.bf16.mxu0 0
    %151 = vmatpush1.bf16.msra.mxu0 %v127
    %152 = vmatprep.subr.bf16.mxu0 0
    %153 = vmatpush1.bf16.msra.mxu0 %v128
    %154 = vmatprep.subr.bf16.mxu0 0
    %155 = vmatpush1.bf16.msra.mxu0 0
    %156 = vmatprep.subr.bf16.mxu0 0
    %157 = vmatpush1.bf16.msra.mxu0 0
    %158 = vmatprep.subr.bf16.mxu0 0
    %159 = vmatpush1.bf16.msra.mxu0 0
    %160 = vmatprep.subr.bf16.mxu0 0
    %161 = vmatpush1.bf16.msra.mxu0 0
    %162 = vmatprep.subr.bf16.mxu0 0
    %163 = vmatpush1.bf16.msra.mxu0 0
    %164 = vmatprep.subr.bf16.mxu0 0
    %165 = vmatpush1.bf16.msra.mxu0 0
    %166 = vmatprep.subr.bf16.mxu0 0
    %167 = vmatpush1.bf16.msra.mxu0 0
    %168 = vmatprep.subr.bf16.mxu0 0
    %169 = vmatpush1.bf16.msra.mxu0 0
    %170 = vmatprep.subr.bf16.mxu0 0
    %171 = vmatpush1.bf16.msra.mxu0 0
    %172 = vmatprep.subr.bf16.mxu0 0
    %173 = vmatpush1.bf16.msra.mxu0 0
    %174 = vmatprep.subr.bf16.mxu0 0
    %175 = vmatpush1.bf16.msra.mxu0 0
    %176 = vmatprep.subr.bf16.mxu0 0
    %177 = vmatpush1.bf16.msra.mxu0 0
    %178 = vmatprep.subr.bf16.mxu0 0
    %179 = vmatpush1.bf16.msra.mxu0 0
    %180 = vmatprep.subr.bf16.mxu0 0
    %181 = vmatpush1.bf16.msra.mxu0 0
    %182 = vmatprep.mubr.bf16.mxu0 0
    %183 = vmatmul.mubr.bf16.gmra.mrb[0].mxu0 %v145
    %v184 = vpop.f32.mrb[0].mxu0
    %v185 = vadd.f32 0.0, %v184
    %v186 = vpop.f32.mrb[0].mxu0
    %v187 = vpop.f32.mrb[0].mxu0
    %v188 = vadd.f32 0.0, %v187
    %v189 = vpop.f32.mrb[0].mxu0
    %190 = vmatprep.mubr.bf16.mxu0 0
    %191 = vmatmul.mubr.bf16.gmra.mrb[0].mxu0 %v148
    %v192 = vpop.f32.mrb[0].mxu0
    %v193 = vadd.f32 0.0, %v192
    %v194 = vpop.f32.mrb[0].mxu0
    %v195 = vpop.f32.mrb[0].mxu0
    %v196 = vadd.f32 0.0, %v195
    %v197 = vpop.f32.mrb[0].mxu0
    %198 = vdwg.mxu0
    %v199 = vld [vmem:[#allocation5] sm:$0xf]
    %v200 = vld [vmem:[#allocation5 + $0x4] sm:$0xf]
    %v201 = vld [vmem:[#allocation5 + $0x8] sm:$0xf]
    %v202 = vld [vmem:[#allocation5 + $0xc] sm:$0xf]
    %v207 = vunpack.c.l.b16 %v199
    %v208 = vunpack.c.l.b16 %v200
    %v209 = vunpack.c.l.b16 %v201
    %v210 = vunpack.c.l.b16 %v202
    %v211 = vpack.c.b16 %v208, %v207
    %v212 = vpack.c.b16 %v210, %v209
    %v214 = vsel %vm143, %v211, 0
    %v217 = vsel %vm143, %v212, 0
    %219 = vmatprep.subr.bf16.mxu0 0
    %220 = vmatpush1.bf16.msra.mxu0 %v127
    %221 = vmatprep.subr.bf16.mxu0 0
    %222 = vmatpush1.bf16.msra.mxu0 %v128
    %223 = vmatprep.subr.bf16.mxu0 0
    %224 = vmatpush1.bf16.msra.mxu0 0
    %225 = vmatprep.subr.bf16.mxu0 0
    %226 = vmatpush1.bf16.msra.mxu0 0
    %227 = vmatprep.subr.bf16.mxu0 0
    %228 = vmatpush1.bf16.msra.mxu0 0
    %229 = vmatprep.subr.bf16.mxu0 0
    %230 = vmatpush1.bf16.msra.mxu0 0
    %231 = vmatprep.subr.bf16.mxu0 0
    %232 = vmatpush1.bf16.msra.mxu0 0
    %233 = vmatprep.subr.bf16.mxu0 0
    %234 = vmatpush1.bf16.msra.mxu0 0
    %235 = vmatprep.subr.bf16.mxu0 0
    %236 = vmatpush1.bf16.msra.mxu0 0
    %237 = vmatprep.subr.bf16.mxu0 0
    %238 = vmatpush1.bf16.msra.mxu0 0
    %239 = vmatprep.subr.bf16.mxu0 0
    %240 = vmatpush1.bf16.msra.mxu0 0
    %241 = vmatprep.subr.bf16.mxu0 0
    %242 = vmatpush1.bf16.msra.mxu0 0
    %243 = vmatprep.subr.bf16.mxu0 0
    %244 = vmatpush1.bf16.msra.mxu0 0
    %245 = vmatprep.subr.bf16.mxu0 0
    %246 = vmatpush1.bf16.msra.mxu0 0
    %247 = vmatprep.subr.bf16.mxu0 0
    %248 = vmatpush1.bf16.msra.mxu0 0
    %249 = vmatprep.subr.bf16.mxu0 0
    %250 = vmatpush1.bf16.msra.mxu0 0
    %251 = vmatprep.mubr.bf16.mxu0 0
    %252 = vmatmul.mubr.bf16.gmra.mrb[0].mxu0 %v214
    %v253 = vpop.f32.mrb[0].mxu0
    %v254 = vadd.f32 0.0, %v253
    %v255 = vpop.f32.mrb[0].mxu0
    %v256 = vpop.f32.mrb[0].mxu0
    %v257 = vadd.f32 0.0, %v256
    %v258 = vpop.f32.mrb[0].mxu0
    %259 = vmatprep.mubr.bf16.mxu0 0
    %260 = vmatmul.mubr.bf16.gmra.mrb[0].mxu0 %v217
    %v261 = vpop.f32.mrb[0].mxu0
    %v262 = vadd.f32 0.0, %v261
    %v263 = vpop.f32.mrb[0].mxu0
    %v264 = vpop.f32.mrb[0].mxu0
    %v265 = vadd.f32 0.0, %v264
    %v266 = vpop.f32.mrb[0].mxu0
    %267 = vdwg.mxu0
    %v268 = vld [vmem:[#allocation10] sm:$0xff]
    %v269 = vld [vmem:[#allocation10 + $0x8] sm:$0xff]
    %v270 = vld [vmem:[#allocation10 + $0x10] sm:$0xff]
    %v271 = vld [vmem:[#allocation10 + $0x18] sm:$0xff]
    %v272 = vld [vmem:[#allocation10 + $0x20] sm:$0xff]
    %v273 = vld [vmem:[#allocation10 + $0x28] sm:$0xff]
    %v274 = vld [vmem:[#allocation10 + $0x30] sm:$0xff]
    %v275 = vld [vmem:[#allocation10 + $0x38] sm:$0xff]
    %v276 = vld [vmem:[#allocation11] sm:$0xff]
    %v277 = vld [vmem:[#allocation11 + $0x8] sm:$0xff]
    %v278 = vld [vmem:[#allocation11 + $0x10] sm:$0xff]
    %v279 = vld [vmem:[#allocation11 + $0x18] sm:$0xff]
    %v280 = vld [vmem:[#allocation11 + $0x20] sm:$0xff]
    %v281 = vld [vmem:[#allocation11 + $0x28] sm:$0xff]
    %v282 = vld [vmem:[#allocation11 + $0x30] sm:$0xff]
    %v283 = vld [vmem:[#allocation11 + $0x38] sm:$0xff]
    %vm284 = vcmask 523264
    %v286 = vsel %vm284, %v254, 0
    %v289 = vsel %vm284, %v257, 0
    %v292 = vsel %vm284, %v262, 0
    %v295 = vsel %vm284, %v265, 0
    %297 = vmatprep.subr.mxu0 0.0
    %298 = vmatpush1.msra.mxu0 %v276
    %299 = vmatprep.subr.mxu0 0.0
    %300 = vmatpush1.msra.mxu0 %v277
    %301 = vmatprep.subr.mxu0 0.0
    %302 = vmatpush1.msra.mxu0 %v278
    %303 = vmatprep.subr.mxu0 0.0
    %304 = vmatpush1.msra.mxu0 %v279
    %305 = vmatprep.subr.mxu0 0.0
    %306 = vmatpush1.msra.mxu0 %v280
    %307 = vmatprep.subr.mxu0 0.0
    %308 = vmatpush1.msra.mxu0 %v281
    %309 = vmatprep.subr.mxu0 0.0
    %310 = vmatpush1.msra.mxu0 %v282
    %311 = vmatprep.subr.mxu0 0.0
    %312 = vmatpush1.msra.mxu0 %v283
    %313 = vmatprep.subr.mxu0 0.0
    %314 = vmatpush1.msra.mxu0 0.0
    %315 = vmatprep.subr.mxu0 0.0
    %316 = vmatpush1.msra.mxu0 0.0
    %317 = vmatprep.subr.mxu0 0.0
    %318 = vmatpush1.msra.mxu0 0.0
    %319 = vmatprep.subr.mxu0 0.0
    %320 = vmatpush1.msra.mxu0 0.0
    %321 = vmatprep.subr.mxu0 0.0
    %322 = vmatpush1.msra.mxu0 0.0
    %323 = vmatprep.subr.mxu0 0.0
    %324 = vmatpush1.msra.mxu0 0.0
    %325 = vmatprep.subr.mxu0 0.0
    %326 = vmatpush1.msra.mxu0 0.0
    %327 = vmatprep.subr.mxu0 0.0
    %328 = vmatpush1.msra.mxu0 0.0
    %329 = vmatprep.subr.mxu0 0.0
    %330 = vmatpush1.msra.mxu0 0.0
    %331 = vmatprep.subr.mxu0 0.0
    %332 = vmatpush1.msra.mxu0 0.0
    %333 = vmatprep.subr.mxu0 0.0
    %334 = vmatpush1.msra.mxu0 0.0
    %335 = vmatprep.subr.mxu0 0.0
    %336 = vmatpush1.msra.mxu0 0.0
    %337 = vmatprep.subr.mxu0 0.0
    %338 = vmatpush1.msra.mxu0 0.0
    %339 = vmatprep.subr.mxu0 0.0
    %340 = vmatpush1.msra.mxu0 0.0
    %341 = vmatprep.subr.mxu0 0.0
    %342 = vmatpush1.msra.mxu0 0.0
    %343 = vmatprep.subr.mxu0 0.0
    %344 = vmatpush1.msra.mxu0 0.0
    %345 = vmatprep.subr.mxu0 0.0
    %346 = vmatpush1.msra.mxu0 0.0
    %347 = vmatprep.subr.mxu0 0.0
    %348 = vmatpush1.msra.mxu0 0.0
    %349 = vmatprep.subr.mxu0 0.0
    %350 = vmatpush1.msra.mxu0 0.0
    %351 = vmatprep.subr.mxu0 0.0
    %352 = vmatpush1.msra.mxu0 0.0
    %353 = vmatprep.subr.mxu0 0.0
    %354 = vmatpush1.msra.mxu0 0.0
    %355 = vmatprep.subr.mxu0 0.0
    %356 = vmatpush1.msra.mxu0 0.0
    %357 = vmatprep.subr.mxu0 0.0
    %358 = vmatpush1.msra.mxu0 0.0
    %359 = vmatprep.subr.mxu0 0.0
    %360 = vmatpush1.msra.mxu0 0.0
    %361 = vmatprep.mubr.f32.mxu0 0.0
    %362 = vmatmul.mubr.f32.gmra.mrb[0].mxu0 %v286
    %v363 = vpop.f32.mrb[0].mxu0
    %v364 = vadd.f32 0.0, %v363
    %v365 = vpop.f32.mrb[0].mxu0
    %366 = vmatprep.mubr.f32.mxu0 0.0
    %367 = vmatmul.mubr.f32.gmra.mrb[0].mxu0 %v289
    %v368 = vpop.f32.mrb[0].mxu0
    %v369 = vadd.f32 0.0, %v368
    %v370 = vpop.f32.mrb[0].mxu0
    %371 = vmatprep.mubr.f32.mxu0 0.0
    %372 = vmatmul.mubr.f32.gmra.mrb[0].mxu0 %v292
    %v373 = vpop.f32.mrb[0].mxu0
    %v374 = vadd.f32 0.0, %v373
    %v375 = vpop.f32.mrb[0].mxu0
    %376 = vmatprep.mubr.f32.mxu0 0.0
    %377 = vmatmul.mubr.f32.gmra.mrb[0].mxu0 %v295
    %v378 = vpop.f32.mrb[0].mxu0
    %v379 = vadd.f32 0.0, %v378
    %v380 = vpop.f32.mrb[0].mxu0
    %381 = vdwg.mxu0
    %v383 = vsel %vm284, %v185, 0
    %v386 = vsel %vm284, %v188, 0
    %v389 = vsel %vm284, %v193, 0
    %v392 = vsel %vm284, %v196, 0
    %394 = vmatprep.subr.mxu0 0.0
    %395 = vmatpush1.msra.mxu0 %v268
    %396 = vmatprep.subr.mxu0 0.0
    %397 = vmatpush1.msra.mxu0 %v269
    %398 = vmatprep.subr.mxu0 0.0
    %399 = vmatpush1.msra.mxu0 %v270
    %400 = vmatprep.subr.mxu0 0.0
    %401 = vmatpush1.msra.mxu0 %v271
    %402 = vmatprep.subr.mxu0 0.0
    %403 = vmatpush1.msra.mxu0 %v272
    %404 = vmatprep.subr.mxu0 0.0
    %405 = vmatpush1.msra.mxu0 %v273
    %406 = vmatprep.subr.mxu0 0.0
    %407 = vmatpush1.msra.mxu0 %v274
    %408 = vmatprep.subr.mxu0 0.0
    %409 = vmatpush1.msra.mxu0 %v275
    %410 = vmatprep.subr.mxu0 0.0
    %411 = vmatpush1.msra.mxu0 0.0
    %412 = vmatprep.subr.mxu0 0.0
    %413 = vmatpush1.msra.mxu0 0.0
    %414 = vmatprep.subr.mxu0 0.0
    %415 = vmatpush1.msra.mxu0 0.0
    %416 = vmatprep.subr.mxu0 0.0
    %417 = vmatpush1.msra.mxu0 0.0
    %418 = vmatprep.subr.mxu0 0.0
    %419 = vmatpush1.msra.mxu0 0.0
    %420 = vmatprep.subr.mxu0 0.0
    %421 = vmatpush1.msra.mxu0 0.0
    %422 = vmatprep.subr.mxu0 0.0
    %423 = vmatpush1.msra.mxu0 0.0
    %424 = vmatprep.subr.mxu0 0.0
    %425 = vmatpush1.msra.mxu0 0.0
    %426 = vmatprep.subr.mxu0 0.0
    %427 = vmatpush1.msra.mxu0 0.0
    %428 = vmatprep.subr.mxu0 0.0
    %429 = vmatpush1.msra.mxu0 0.0
    %430 = vmatprep.subr.mxu0 0.0
    %431 = vmatpush1.msra.mxu0 0.0
    %432 = vmatprep.subr.mxu0 0.0
    %433 = vmatpush1.msra.mxu0 0.0
    %434 = vmatprep.subr.mxu0 0.0
    %435 = vmatpush1.msra.mxu0 0.0
    %436 = vmatprep.subr.mxu0 0.0
    %437 = vmatpush1.msra.mxu0 0.0
    %438 = vmatprep.subr.mxu0 0.0
    %439 = vmatpush1.msra.mxu0 0.0
    %440 = vmatprep.subr.mxu0 0.0
    %441 = vmatpush1.msra.mxu0 0.0
    %442 = vmatprep.subr.mxu0 0.0
    %443 = vmatpush1.msra.mxu0 0.0
    %444 = vmatprep.subr.mxu0 0.0
    %445 = vmatpush1.msra.mxu0 0.0
    %446 = vmatprep.subr.mxu0 0.0
    %447 = vmatpush1.msra.mxu0 0.0
    %448 = vmatprep.subr.mxu0 0.0
    %449 = vmatpush1.msra.mxu0 0.0
    %450 = vmatprep.subr.mxu0 0.0
    %451 = vmatpush1.msra.mxu0 0.0
    %452 = vmatprep.subr.mxu0 0.0
    %453 = vmatpush1.msra.mxu0 0.0
    %454 = vmatprep.subr.mxu0 0.0
    %455 = vmatpush1.msra.mxu0 0.0
    %456 = vmatprep.subr.mxu0 0.0
    %457 = vmatpush1.msra.mxu0 0.0
    %458 = vmatprep.mubr.f32.mxu0 0.0
    %459 = vmatmul.mubr.f32.gmra.mrb[0].mxu0 %v383
    %v460 = vpop.f32.mrb[0].mxu0
    %v461 = vadd.f32 %v364, %v460
    %v462 = vpop.f32.mrb[0].mxu0
    %463 = vmatprep.mubr.f32.mxu0 0.0
    %464 = vmatmul.mubr.f32.gmra.mrb[0].mxu0 %v386
    %v465 = vpop.f32.mrb[0].mxu0
    %v466 = vadd.f32 %v369, %v465
    %v467 = vpop.f32.mrb[0].mxu0
    %468 = vmatprep.mubr.f32.mxu0 0.0
    %469 = vmatmul.mubr.f32.gmra.mrb[0].mxu0 %v389
    %v470 = vpop.f32.mrb[0].mxu0
    %v471 = vadd.f32 %v374, %v470
    %v472 = vpop.f32.mrb[0].mxu0
    %473 = vmatprep.mubr.f32.mxu0 0.0
    %474 = vmatmul.mubr.f32.gmra.mrb[0].mxu0 %v392
    %v475 = vpop.f32.mrb[0].mxu0
    %v476 = vadd.f32 %v379, %v475
    %v477 = vpop.f32.mrb[0].mxu0
    %478 = vdwg.mxu0
    %v479 = vld [vmem:[#allocation8] sm:$0xff]
    %v480 = vld [vmem:[#allocation8 + $0x8] sm:$0xff]
    %v481 = vld [vmem:[#allocation8 + $0x10] sm:$0xff]
    %v482 = vld [vmem:[#allocation8 + $0x18] sm:$0xff]
    %v483 = vld [vmem:[#allocation13] sm:$0xff]
    %v484 = vld [vmem:[#allocation13 + $0x8] sm:$0xff]
    %v485 = vld [vmem:[#allocation13 + $0x10] sm:$0xff]
    %v486 = vld [vmem:[#allocation13 + $0x18] sm:$0xff]
    %v487 = vld [vmem:[#allocation13 + $0x20] sm:$0xff]
    %v488 = vld [vmem:[#allocation13 + $0x28] sm:$0xff]
    %v489 = vld [vmem:[#allocation13 + $0x30] sm:$0xff]
    %v490 = vld [vmem:[#allocation13 + $0x38] sm:$0xff]
    %v492 = vsel %vm284, %v479, 0
    %v495 = vsel %vm284, %v480, 0
    %v498 = vsel %vm284, %v481, 0
    %v501 = vsel %vm284, %v482, 0
    %503 = vmatprep.subr.mxu0 0.0
    %504 = vmatpush1.msra.mxu0 %v483
    %505 = vmatprep.subr.mxu0 0.0
    %506 = vmatpush1.msra.mxu0 %v484
    %507 = vmatprep.subr.mxu0 0.0
    %508 = vmatpush1.msra.mxu0 %v485
    %509 = vmatprep.subr.mxu0 0.0
    %510 = vmatpush1.msra.mxu0 %v486
    %511 = vmatprep.subr.mxu0 0.0
    %512 = vmatpush1.msra.mxu0 %v487
    %513 = vmatprep.subr.mxu0 0.0
    %514 = vmatpush1.msra.mxu0 %v488
    %515 = vmatprep.subr.mxu0 0.0
    %516 = vmatpush1.msra.mxu0 %v489
    %517 = vmatprep.subr.mxu0 0.0
    %518 = vmatpush1.msra.mxu0 %v490
    %519 = vmatprep.subr.mxu0 0.0
    %520 = vmatpush1.msra.mxu0 0.0
    %521 = vmatprep.subr.mxu0 0.0
    %522 = vmatpush1.msra.mxu0 0.0
    %523 = vmatprep.subr.mxu0 0.0
    %524 = vmatpush1.msra.mxu0 0.0
    %525 = vmatprep.subr.mxu0 0.0
    %526 = vmatpush1.msra.mxu0 0.0
    %527 = vmatprep.subr.mxu0 0.0
    %528 = vmatpush1.msra.mxu0 0.0
    %529 = vmatprep.subr.mxu0 0.0
    %530 = vmatpush1.msra.mxu0 0.0
    %531 = vmatprep.subr.mxu0 0.0
    %532 = vmatpush1.msra.mxu0 0.0
    %533 = vmatprep.subr.mxu0 0.0
    %534 = vmatpush1.msra.mxu0 0.0
    %535 = vmatprep.subr.mxu0 0.0
    %536 = vmatpush1.msra.mxu0 0.0
    %537 = vmatprep.subr.mxu0 0.0
    %538 = vmatpush1.msra.mxu0 0.0
    %539 = vmatprep.subr.mxu0 0.0
    %540 = vmatpush1.msra.mxu0 0.0
    %541 = vmatprep.subr.mxu0 0.0
    %542 = vmatpush1.msra.mxu0 0.0
    %543 = vmatprep.subr.mxu0 0.0
    %544 = vmatpush1.msra.mxu0 0.0
    %545 = vmatprep.subr.mxu0 0.0
    %546 = vmatpush1.msra.mxu0 0.0
    %547 = vmatprep.subr.mxu0 0.0
    %548 = vmatpush1.msra.mxu0 0.0
    %549 = vmatprep.subr.mxu0 0.0
    %550 = vmatpush1.msra.mxu0 0.0
    %551 = vmatprep.subr.mxu0 0.0
    %552 = vmatpush1.msra.mxu0 0.0
    %553 = vmatprep.subr.mxu0 0.0
    %554 = vmatpush1.msra.mxu0 0.0
    %555 = vmatprep.subr.mxu0 0.0
    %556 = vmatpush1.msra.mxu0 0.0
    %557 = vmatprep.subr.mxu0 0.0
    %558 = vmatpush1.msra.mxu0 0.0
    %559 = vmatprep.subr.mxu0 0.0
    %560 = vmatpush1.msra.mxu0 0.0
    %561 = vmatprep.subr.mxu0 0.0
    %562 = vmatpush1.msra.mxu0 0.0
    %563 = vmatprep.subr.mxu0 0.0
    %564 = vmatpush1.msra.mxu0 0.0
    %565 = vmatprep.subr.mxu0 0.0
    %566 = vmatpush1.msra.mxu0 0.0
    %567 = vmatprep.mubr.f32.mxu0 0.0
    %568 = vmatmul.mubr.f32.gmra.mrb[0].mxu0 %v492
    %v569 = vpop.f32.mrb[0].mxu0
    %v570 = vadd.f32 0.0, %v569
    %v571 = vpop.f32.mrb[0].mxu0
    %572 = vmatprep.mubr.f32.mxu0 0.0
    %573 = vmatmul.mubr.f32.gmra.mrb[0].mxu0 %v495
    %v574 = vpop.f32.mrb[0].mxu0
    %v575 = vadd.f32 0.0, %v574
    %v576 = vpop.f32.mrb[0].mxu0
    %577 = vmatprep.mubr.f32.mxu0 0.0
    %578 = vmatmul.mubr.f32.gmra.mrb[0].mxu0 %v498
    %v579 = vpop.f32.mrb[0].mxu0
    %v580 = vadd.f32 0.0, %v579
    %v581 = vpop.f32.mrb[0].mxu0
    %582 = vmatprep.mubr.f32.mxu0 0.0
    %583 = vmatmul.mubr.f32.gmra.mrb[0].mxu0 %v501
    %v584 = vpop.f32.mrb[0].mxu0
    %v585 = vadd.f32 0.0, %v584
    %v586 = vpop.f32.mrb[0].mxu0
    %587 = vdwg.mxu0
    %v588 = vadd.f32 %v461, %v570
    %v589 = vadd.f32 %v466, %v575
    %v590 = vadd.f32 %v471, %v580
    %v591 = vadd.f32 %v476, %v585
    %v592 = vtanh.pop %v588
    %v593 = vtanh.pop %v589
    %v594 = vtanh.pop %v590
    %v595 = vtanh.pop %v591
    %596 = vst.msk [vmem:[#allocation14] sm:$0xff] %vm284, %v592
    %597 = vst.msk [vmem:[#allocation14 + $0x8] sm:$0xff] %vm284, %v593
    %598 = vst.msk [vmem:[#allocation14 + $0x10] sm:$0xff] %vm284, %v594
    %599 = vst.msk [vmem:[#allocation14 + $0x18] sm:$0xff] %vm284, %v595
    // Predicated region
    $region58: #{sgcn_forward.4} parent=1 // pred_check
      _
    $region59: #{sgcn_forward.4} parent=1 // pred_check_branch
      %601 = sbr.rel (0) target = $region61
    $region60: #{sgcn_forward.4} parent=1 // pred_region
      %s603 = ssub.s32 512, 512
      %604 = vsyncadd [#allocation4], %s603
      %s605 = sshll.u32 [#allocation14], 4
      %s606 = int_to_ptr.vmem [resolvable:$true] %s605
      %611 = dma.vmem_to_hbm [thread:$0]  %s606, 512, %s7, [#allocation4], 128, 128, 8
    $region61: #{sgcn_forward.4} parent=1 // pred_fallthru
      _
    // Predicated region
    $region62: #{sgcn_forward.4} parent=1 // pred_check
      _
    $region63: #{sgcn_forward.4} parent=1 // pred_check_branch
      %613 = sbr.rel (0) target = $region65
    $region64: #{sgcn_forward.4} parent=1 // pred_region
      %614 = dma.done [#allocation4], 512
    $region65: #{sgcn_forward.4} parent=1 // pred_fallthru
      _
    %615 = vsyncpa [#allocation3], 1
    %616 = vsyncpa [#allocation6], 1
    %617 = vsyncpa [#allocation9], 1
    %618 = vsyncpa [#allocation12], 1
    %619 = vsyncpa [#allocation4], 1

// kernel: sgcn_forward.5
$region0: #{sgcn_forward.5}
  #allocation0 [shape = 'u32[]', space=smem, size = 0x4, offset = 0x4, fixed_abs, tag = 'smem constant byte address 0x4 - core index']
  #allocation1 [shape = 'u32[144,128]{1,0:T(1,128)}', space=vmem, size = 0x12000, scoped, tag = 'internal scratch']
  %s0 = inlined_call_operand.vmem [shape: f32[40,64], index: 0, kind: input, shape index: {}]
  %s1 = inlined_call_operand.vmem [shape: f32[40,64], index: 1, kind: input, shape index: {}]
  %s2 = inlined_call_operand.vmem [shape: f32[40,64], index: 2, kind: input, shape index: {}]
  %s3 = inlined_call_operand.vmem [shape: f32[24,64], index: 3, kind: input, shape index: {}]
  %s4 = inlined_call_operand.vmem [shape: f32[24,64], index: 4, kind: input, shape index: {}]
  %s5 = inlined_call_operand.vmem [shape: f32[24,64], index: 5, kind: input, shape index: {}]
  %s6 = inlined_call_operand.vmem [shape: f32[40,2], index: 6, kind: input, shape index: {}]
  %s7 = inlined_call_operand.vmem [shape: f32[24,2], index: 7, kind: input, shape index: {}]
  %s8 = inlined_call_operand.vmem [shape: f32[128,2], index: 8, kind: input, shape index: {}]
  %s9 = inlined_call_operand.hbm [shape: f32[1,128], index: 9, kind: output, shape index: {}]
  %s10 = sld [smem:[#allocation0]]
  $region46: #{sgcn_forward.5} parent=0
    _
  %s12 = ssub.s32 1, %s10
  %s13 = scalar_select 0, %s12, %s10
  $region1: #{sgcn_forward.5} parent=0
    #allocation2 [shape = 'u8[512]{0}', space=vmem, size = 0x400, scoped, tag = 'output window, operand 0, single buffered']
    #allocation3 [shape = 's32[1]{0}', space=sflag, size = 0x4, scoped, tag = 'scoped memory for sgcn_forward.5']
    %14 = vsyncpa [#allocation3], 0
    // Predicated region
    $region2: #{sgcn_forward.5} parent=1 // pred_check
      _
    $region3: #{sgcn_forward.5} parent=1 // pred_check_branch
      %16 = sbr.rel (0) target = $region5
    $region4: #{sgcn_forward.5} parent=1 // pred_region
      _
    $region5: #{sgcn_forward.5} parent=1 // pred_fallthru
      _
    // Predicated region
    $region6: #{sgcn_forward.5} parent=1 // pred_check
      _
    $region7: #{sgcn_forward.5} parent=1 // pred_check_branch
      %18 = sbr.rel (0) target = $region9
    $region8: #{sgcn_forward.5} parent=1 // pred_region
      _
    $region9: #{sgcn_forward.5} parent=1 // pred_fallthru
      _
    // Predicated region
    $region10: #{sgcn_forward.5} parent=1 // pred_check
      _
    $region11: #{sgcn_forward.5} parent=1 // pred_check_branch
      %20 = sbr.rel (0) target = $region13
    $region12: #{sgcn_forward.5} parent=1 // pred_region
      _
    $region13: #{sgcn_forward.5} parent=1 // pred_fallthru
      _
    // Predicated region
    $region14: #{sgcn_forward.5} parent=1 // pred_check
      _
    $region15: #{sgcn_forward.5} parent=1 // pred_check_branch
      %22 = sbr.rel (0) target = $region17
    $region16: #{sgcn_forward.5} parent=1 // pred_region
      _
    $region17: #{sgcn_forward.5} parent=1 // pred_fallthru
      _
    // Predicated region
    $region18: #{sgcn_forward.5} parent=1 // pred_check
      _
    $region19: #{sgcn_forward.5} parent=1 // pred_check_branch
      %24 = sbr.rel (0) target = $region21
    $region20: #{sgcn_forward.5} parent=1 // pred_region
      _
    $region21: #{sgcn_forward.5} parent=1 // pred_fallthru
      _
    // Predicated region
    $region22: #{sgcn_forward.5} parent=1 // pred_check
      _
    $region23: #{sgcn_forward.5} parent=1 // pred_check_branch
      %26 = sbr.rel (0) target = $region25
    $region24: #{sgcn_forward.5} parent=1 // pred_region
      _
    $region25: #{sgcn_forward.5} parent=1 // pred_fallthru
      _
    // Predicated region
    $region26: #{sgcn_forward.5} parent=1 // pred_check
      _
    $region27: #{sgcn_forward.5} parent=1 // pred_check_branch
      %28 = sbr.rel (0) target = $region29
    $region28: #{sgcn_forward.5} parent=1 // pred_region
      _
    $region29: #{sgcn_forward.5} parent=1 // pred_fallthru
      _
    // Predicated region
    $region30: #{sgcn_forward.5} parent=1 // pred_check
      _
    $region31: #{sgcn_forward.5} parent=1 // pred_check_branch
      %30 = sbr.rel (0) target = $region33
    $region32: #{sgcn_forward.5} parent=1 // pred_region
      _
    $region33: #{sgcn_forward.5} parent=1 // pred_fallthru
      _
    // Predicated region
    $region34: #{sgcn_forward.5} parent=1 // pred_check
      _
    $region35: #{sgcn_forward.5} parent=1 // pred_check_branch
      %32 = sbr.rel (0) target = $region37
    $region36: #{sgcn_forward.5} parent=1 // pred_region
      _
    $region37: #{sgcn_forward.5} parent=1 // pred_fallthru
      _
    %v33 = vld [vmem:[%s8] sm:$0xff]
    %v34 = vld [vmem:[%s8 + $0x8] sm:$0xff]
    %v35 = vld [vmem:[%s8 + $0x10] sm:$0xff]
    %v36 = vld [vmem:[%s8 + $0x18] sm:$0xff]
    %v37 = vld [vmem:[%s8 + $0x20] sm:$0xff]
    %v38 = vld [vmem:[%s8 + $0x28] sm:$0xff]
    %v39 = vld [vmem:[%s8 + $0x30] sm:$0xff]
    %v40 = vld [vmem:[%s8 + $0x38] sm:$0xff]
    %v41 = vld [vmem:[%s8 + $0x40] sm:$0xff]
    %v42 = vld [vmem:[%s8 + $0x48] sm:$0xff]
    %v43 = vld [vmem:[%s8 + $0x50] sm:$0xff]
    %v44 = vld [vmem:[%s8 + $0x58] sm:$0xff]
    %v45 = vld [vmem:[%s8 + $0x60] sm:$0xff]
    %v46 = vld [vmem:[%s8 + $0x68] sm:$0xff]
    %v47 = vld [vmem:[%s8 + $0x70] sm:$0xff]
    %v48 = vld [vmem:[%s8 + $0x78] sm:$0xff]
    %v49 = vld [vmem:[%s0] sm:$0xff]
    %v50 = vld [vmem:[%s0 + $0x8] sm:$0xff]
    %v51 = vld [vmem:[%s0 + $0x10] sm:$0xff]
    %v52 = vld [vmem:[%s0 + $0x18] sm:$0xff]
    %v53 = vld [vmem:[%s0 + $0x20] sm:$0xff]
    %v54 = vld [vmem:[%s1] sm:$0xff]
    %v55 = vld [vmem:[%s1 + $0x8] sm:$0xff]
    %v56 = vld [vmem:[%s1 + $0x10] sm:$0xff]
    %v57 = vld [vmem:[%s1 + $0x18] sm:$0xff]
    %v58 = vld [vmem:[%s1 + $0x20] sm:$0xff]
    %v59 = vld [vmem:[%s2] sm:$0xff]
    %v60 = vld [vmem:[%s2 + $0x8] sm:$0xff]
    %v61 = vld [vmem:[%s2 + $0x10] sm:$0xff]
    %v62 = vld [vmem:[%s2 + $0x18] sm:$0xff]
    %v63 = vld [vmem:[%s2 + $0x20] sm:$0xff]
    %v64 = vld [vmem:[%s3] sm:$0xff]
    %v65 = vld [vmem:[%s3 + $0x8] sm:$0xff]
    %v66 = vld [vmem:[%s3 + $0x10] sm:$0xff]
    %v67 = vld [vmem:[%s4] sm:$0xff]
    %v68 = vld [vmem:[%s4 + $0x8] sm:$0xff]
    %v69 = vld [vmem:[%s4 + $0x10] sm:$0xff]
    %v70 = vld [vmem:[%s5] sm:$0xff]
    %v71 = vld [vmem:[%s5 + $0x8] sm:$0xff]
    %v72 = vld [vmem:[%s5 + $0x10] sm:$0xff]
    %v73 = vsub.f32 %v49, %v54
    %v74 = vsub.f32 %v50, %v55
    %v75 = vsub.f32 %v51, %v56
    %v76 = vsub.f32 %v52, %v57
    %v77 = vsub.f32 %v53, %v58
    %v78 = vsub.f32 %v54, %v59
    %v79 = vsub.f32 %v55, %v60
    %v80 = vsub.f32 %v56, %v61
    %v81 = vsub.f32 %v57, %v62
    %v82 = vsub.f32 %v58, %v63
    %v83 = vmul.f32 %v73, %v73
    %v84 = vmul.f32 %v74, %v74
    %v85 = vmul.f32 %v75, %v75
    %v86 = vmul.f32 %v76, %v76
    %v87 = vmul.f32 %v77, %v77
    %vm88 = vcmask 523264
    %v89 = vsel %vm88, %v83, 0.0
    %90 = vadd.xlane.f32.xlu0 %v89
    %v91 = vpop.xlane.xlu0 %90
    %v92 = vsel %vm88, %v84, 0.0
    %93 = vadd.xlane.f32.xlu0 %v92
    %v94 = vpop.xlane.xlu0 %93
    %v95 = vsel %vm88, %v85, 0.0
    %96 = vadd.xlane.f32.xlu0 %v95
    %v97 = vpop.xlane.xlu0 %96
    %v98 = vsel %vm88, %v86, 0.0
    %99 = vadd.xlane.f32.xlu0 %v98
    %v100 = vpop.xlane.xlu0 %99
    %v101 = vsel %vm88, %v87, 0.0
    %102 = vadd.xlane.f32.xlu0 %v101
    %v103 = vpop.xlane.xlu0 %102
    %v104 = vmul.f32 %v78, %v78
    %v105 = vmul.f32 %v79, %v79
    %v106 = vmul.f32 %v80, %v80
    %v107 = vmul.f32 %v81, %v81
    %v108 = vmul.f32 %v82, %v82
    %v109 = vsel %vm88, %v104, 0.0
    %110 = vadd.xlane.f32.xlu0 %v109
    %v111 = vpop.xlane.xlu0 %110
    %v112 = vsel %vm88, %v105, 0.0
    %113 = vadd.xlane.f32.xlu0 %v112
    %v114 = vpop.xlane.xlu0 %113
    %v115 = vsel %vm88, %v106, 0.0
    %116 = vadd.xlane.f32.xlu0 %v115
    %v117 = vpop.xlane.xlu0 %116
    %v118 = vsel %vm88, %v107, 0.0
    %119 = vadd.xlane.f32.xlu0 %v118
    %v120 = vpop.xlane.xlu0 %119
    %v121 = vsel %vm88, %v108, 0.0
    %122 = vadd.xlane.f32.xlu0 %v121
    %v123 = vpop.xlane.xlu0 %122
    %v124 = vsub.f32 %v91, %v111
    %v125 = vsub.f32 %v94, %v114
    %v126 = vsub.f32 %v97, %v117
    %v127 = vsub.f32 %v100, %v120
    %v128 = vsub.f32 %v103, %v123
    %v129 = vmax.f32 %v124, 0.0
    %v130 = vmax.f32 %v125, 0.0
    %v131 = vmax.f32 %v126, 0.0
    %v132 = vmax.f32 %v127, 0.0
    %v133 = vmax.f32 %v128, 0.0
    %vm134 = vcmask 7168
    %v135 = vsel %vm134, %v129, 0.0
    %v136 = vsel %vm134, %v130, 0.0
    %v137 = vadd.f32 %v135, %v136
    %v138 = vsel %vm134, %v131, 0.0
    %v139 = vadd.f32 %v137, %v138
    %v140 = vsel %vm134, %v132, 0.0
    %v141 = vadd.f32 %v139, %v140
    %v142 = vsel %vm134, %v133, 0.0
    %v143 = vadd.f32 %v141, %v142
    %144 = vadd.xlane.f32.xlu0 %v143
    %v145 = vpop.xlane.xlu0 %144
    %v146 = vrot.slane %v145, 4
    %v147 = vadd.f32 %v145, %v146
    %v148 = vrot.slane %v147, 2
    %v149 = vadd.f32 %v147, %v148
    %v150 = vrot.slane %v149, 1
    %v151 = vadd.f32 %v149, %v150
    %s152 = vtos %v151
    %v153 = vrcp.pop 40.0
    %s154 = vtos %v153
    %s155 = smul.f32 %s152, %s154
    %v156 = vsub.f32 %v64, %v67
    %v157 = vsub.f32 %v65, %v68
    %v158 = vsub.f32 %v66, %v69
    %v159 = vsub.f32 %v67, %v70
    %v160 = vsub.f32 %v68, %v71
    %v161 = vsub.f32 %v69, %v72
    %v162 = vmul.f32 %v156, %v156
    %v163 = vmul.f32 %v157, %v157
    %v164 = vmul.f32 %v158, %v158
    %v165 = vsel %vm88, %v162, 0.0
    %166 = vadd.xlane.f32.xlu0 %v165
    %v167 = vpop.xlane.xlu0 %166
    %v168 = vsel %vm88, %v163, 0.0
    %169 = vadd.xlane.f32.xlu0 %v168
    %v170 = vpop.xlane.xlu0 %169
    %v171 = vsel %vm88, %v164, 0.0
    %172 = vadd.xlane.f32.xlu0 %v171
    %v173 = vpop.xlane.xlu0 %172
    %v174 = vmul.f32 %v159, %v159
    %v175 = vmul.f32 %v160, %v160
    %v176 = vmul.f32 %v161, %v161
    %v177 = vsel %vm88, %v174, 0.0
    %178 = vadd.xlane.f32.xlu0 %v177
    %v179 = vpop.xlane.xlu0 %178
    %v180 = vsel %vm88, %v175, 0.0
    %181 = vadd.xlane.f32.xlu0 %v180
    %v182 = vpop.xlane.xlu0 %181
    %v183 = vsel %vm88, %v176, 0.0
    %184 = vadd.xlane.f32.xlu0 %v183
    %v185 = vpop.xlane.xlu0 %184
    %v186 = vsub.f32 %v167, %v179
    %v187 = vsub.f32 %v170, %v182
    %v188 = vsub.f32 %v173, %v185
    %v189 = vmax.f32 %v186, 0.0
    %v190 = vmax.f32 %v187, 0.0
    %v191 = vmax.f32 %v188, 0.0
    %v192 = vsel %vm134, %v189, 0.0
    %v193 = vsel %vm134, %v190, 0.0
    %v194 = vadd.f32 %v192, %v193
    %v195 = vsel %vm134, %v191, 0.0
    %v196 = vadd.f32 %v194, %v195
    %197 = vadd.xlane.f32.xlu0 %v196
    %v198 = vpop.xlane.xlu0 %197
    %v199 = vrot.slane %v198, 4
    %v200 = vadd.f32 %v198, %v199
    %v201 = vrot.slane %v200, 2
    %v202 = vadd.f32 %v200, %v201
    %v203 = vrot.slane %v202, 1
    %v204 = vadd.f32 %v202, %v203
    %s205 = vtos %v204
    %v206 = vrcp.pop 24.0
    %s207 = vtos %v206
    %s208 = smul.f32 %s205, %s207
    %v209 = vld [vmem:[%s6] sm:$0xff]
    %v210 = vld [vmem:[%s6 + $0x8] sm:$0xff]
    %v211 = vld [vmem:[%s6 + $0x10] sm:$0xff]
    %v212 = vld [vmem:[%s6 + $0x18] sm:$0xff]
    %v213 = vld [vmem:[%s6 + $0x20] sm:$0xff]
    %v215 = vsel %vm88, %v54, 0
    %v218 = vsel %vm88, %v55, 0
    %v221 = vsel %vm88, %v56, 0
    %v224 = vsel %vm88, %v57, 0
    %v227 = vsel %vm88, %v58, 0
    %229 = vmatprep.subr.mxu0 0.0
    %230 = vmatpush1.msra.mxu0 %v41
    %231 = vmatprep.subr.mxu0 0.0
    %232 = vmatpush1.msra.mxu0 %v42
    %233 = vmatprep.subr.mxu0 0.0
    %234 = vmatpush1.msra.mxu0 %v43
    %235 = vmatprep.subr.mxu0 0.0
    %236 = vmatpush1.msra.mxu0 %v44
    %237 = vmatprep.subr.mxu0 0.0
    %238 = vmatpush1.msra.mxu0 %v45
    %239 = vmatprep.subr.mxu0 0.0
    %240 = vmatpush1.msra.mxu0 %v46
    %241 = vmatprep.subr.mxu0 0.0
    %242 = vmatpush1.msra.mxu0 %v47
    %243 = vmatprep.subr.mxu0 0.0
    %244 = vmatpush1.msra.mxu0 %v48
    %245 = vmatprep.subr.mxu0 0.0
    %246 = vmatpush1.msra.mxu0 0.0
    %247 = vmatprep.subr.mxu0 0.0
    %248 = vmatpush1.msra.mxu0 0.0
    %249 = vmatprep.subr.mxu0 0.0
    %250 = vmatpush1.msra.mxu0 0.0
    %251 = vmatprep.subr.mxu0 0.0
    %252 = vmatpush1.msra.mxu0 0.0
    %253 = vmatprep.subr.mxu0 0.0
    %254 = vmatpush1.msra.mxu0 0.0
    %255 = vmatprep.subr.mxu0 0.0
    %256 = vmatpush1.msra.mxu0 0.0
    %257 = vmatprep.subr.mxu0 0.0
    %258 = vmatpush1.msra.mxu0 0.0
    %259 = vmatprep.subr.mxu0 0.0
    %260 = vmatpush1.msra.mxu0 0.0
    %261 = vmatprep.subr.mxu0 0.0
    %262 = vmatpush1.msra.mxu0 0.0
    %263 = vmatprep.subr.mxu0 0.0
    %264 = vmatpush1.msra.mxu0 0.0
    %265 = vmatprep.subr.mxu0 0.0
    %266 = vmatpush1.msra.mxu0 0.0
    %267 = vmatprep.subr.mxu0 0.0
    %268 = vmatpush1.msra.mxu0 0.0
    %269 = vmatprep.subr.mxu0 0.0
    %270 = vmatpush1.msra.mxu0 0.0
    %271 = vmatprep.subr.mxu0 0.0
    %272 = vmatpush1.msra.mxu0 0.0
    %273 = vmatprep.subr.mxu0 0.0
    %274 = vmatpush1.msra.mxu0 0.0
    %275 = vmatprep.subr.mxu0 0.0
    %276 = vmatpush1.msra.mxu0 0.0
    %277 = vmatprep.subr.mxu0 0.0
    %278 = vmatpush1.msra.mxu0 0.0
    %279 = vmatprep.subr.mxu0 0.0
    %280 = vmatpush1.msra.mxu0 0.0
    %281 = vmatprep.subr.mxu0 0.0
    %282 = vmatpush1.msra.mxu0 0.0
    %283 = vmatprep.subr.mxu0 0.0
    %284 = vmatpush1.msra.mxu0 0.0
    %285 = vmatprep.subr.mxu0 0.0
    %286 = vmatpush1.msra.mxu0 0.0
    %287 = vmatprep.subr.mxu0 0.0
    %288 = vmatpush1.msra.mxu0 0.0
    %289 = vmatprep.subr.mxu0 0.0
    %290 = vmatpush1.msra.mxu0 0.0
    %291 = vmatprep.subr.mxu0 0.0
    %292 = vmatpush1.msra.mxu0 0.0
    %293 = vmatprep.mubr.f32.mxu0 0.0
    %294 = vmatmul.mubr.f32.gmra.mrb[0].mxu0 %v215
    %v295 = vpop.f32.mrb[0].mxu0
    %v296 = vadd.f32 0.0, %v295
    %v297 = vpop.f32.mrb[0].mxu0
    %298 = vmatprep.mubr.f32.mxu0 0.0
    %299 = vmatmul.mubr.f32.gmra.mrb[0].mxu0 %v218
    %v300 = vpop.f32.mrb[0].mxu0
    %v301 = vadd.f32 0.0, %v300
    %v302 = vpop.f32.mrb[0].mxu0
    %303 = vmatprep.mubr.f32.mxu0 0.0
    %304 = vmatmul.mubr.f32.gmra.mrb[0].mxu0 %v221
    %v305 = vpop.f32.mrb[0].mxu0
    %v306 = vadd.f32 0.0, %v305
    %v307 = vpop.f32.mrb[0].mxu0
    %308 = vmatprep.mubr.f32.mxu0 0.0
    %309 = vmatmul.mubr.f32.gmra.mrb[0].mxu0 %v224
    %v310 = vpop.f32.mrb[0].mxu0
    %v311 = vadd.f32 0.0, %v310
    %v312 = vpop.f32.mrb[0].mxu0
    %313 = vmatprep.mubr.f32.mxu0 0.0
    %314 = vmatmul.mubr.f32.gmra.mrb[0].mxu0 %v227
    %v315 = vpop.f32.mrb[0].mxu0
    %v316 = vadd.f32 0.0, %v315
    %v317 = vpop.f32.mrb[0].mxu0
    %318 = vdwg.mxu0
    %v320 = vsel %vm88, %v49, 0
    %v323 = vsel %vm88, %v50, 0
    %v326 = vsel %vm88, %v51, 0
    %v329 = vsel %vm88, %v52, 0
    %v332 = vsel %vm88, %v53, 0
    %334 = vmatprep.subr.mxu0 0.0
    %335 = vmatpush1.msra.mxu0 %v33
    %336 = vmatprep.subr.mxu0 0.0
    %337 = vmatpush1.msra.mxu0 %v34
    %338 = vmatprep.subr.mxu0 0.0
    %339 = vmatpush1.msra.mxu0 %v35
    %340 = vmatprep.subr.mxu0 0.0
    %341 = vmatpush1.msra.mxu0 %v36
    %342 = vmatprep.subr.mxu0 0.0
    %343 = vmatpush1.msra.mxu0 %v37
    %344 = vmatprep.subr.mxu0 0.0
    %345 = vmatpush1.msra.mxu0 %v38
    %346 = vmatprep.subr.mxu0 0.0
    %347 = vmatpush1.msra.mxu0 %v39
    %348 = vmatprep.subr.mxu0 0.0
    %349 = vmatpush1.msra.mxu0 %v40
    %350 = vmatprep.subr.mxu0 0.0
    %351 = vmatpush1.msra.mxu0 0.0
    %352 = vmatprep.subr.mxu0 0.0
    %353 = vmatpush1.msra.mxu0 0.0
    %354 = vmatprep.subr.mxu0 0.0
    %355 = vmatpush1.msra.mxu0 0.0
    %356 = vmatprep.subr.mxu0 0.0
    %357 = vmatpush1.msra.mxu0 0.0
    %358 = vmatprep.subr.mxu0 0.0
    %359 = vmatpush1.msra.mxu0 0.0
    %360 = vmatprep.subr.mxu0 0.0
    %361 = vmatpush1.msra.mxu0 0.0
    %362 = vmatprep.subr.mxu0 0.0
    %363 = vmatpush1.msra.mxu0 0.0
    %364 = vmatprep.subr.mxu0 0.0
    %365 = vmatpush1.msra.mxu0 0.0
    %366 = vmatprep.subr.mxu0 0.0
    %367 = vmatpush1.msra.mxu0 0.0
    %368 = vmatprep.subr.mxu0 0.0
    %369 = vmatpush1.msra.mxu0 0.0
    %370 = vmatprep.subr.mxu0 0.0
    %371 = vmatpush1.msra.mxu0 0.0
    %372 = vmatprep.subr.mxu0 0.0
    %373 = vmatpush1.msra.mxu0 0.0
    %374 = vmatprep.subr.mxu0 0.0
    %375 = vmatpush1.msra.mxu0 0.0
    %376 = vmatprep.subr.mxu0 0.0
    %377 = vmatpush1.msra.mxu0 0.0
    %378 = vmatprep.subr.mxu0 0.0
    %379 = vmatpush1.msra.mxu0 0.0
    %380 = vmatprep.subr.mxu0 0.0
    %381 = vmatpush1.msra.mxu0 0.0
    %382 = vmatprep.subr.mxu0 0.0
    %383 = vmatpush1.msra.mxu0 0.0
    %384 = vmatprep.subr.mxu0 0.0
    %385 = vmatpush1.msra.mxu0 0.0
    %386 = vmatprep.subr.mxu0 0.0
    %387 = vmatpush1.msra.mxu0 0.0
    %388 = vmatprep.subr.mxu0 0.0
    %389 = vmatpush1.msra.mxu0 0.0
    %390 = vmatprep.subr.mxu0 0.0
    %391 = vmatpush1.msra.mxu0 0.0
    %392 = vmatprep.subr.mxu0 0.0
    %393 = vmatpush1.msra.mxu0 0.0
    %394 = vmatprep.subr.mxu0 0.0
    %395 = vmatpush1.msra.mxu0 0.0
    %396 = vmatprep.subr.mxu0 0.0
    %397 = vmatpush1.msra.mxu0 0.0
    %398 = vmatprep.mubr.f32.mxu0 0.0
    %399 = vmatmul.mubr.f32.gmra.mrb[0].mxu0 %v320
    %v400 = vpop.f32.mrb[0].mxu0
    %v401 = vadd.f32 %v296, %v400
    %v402 = vpop.f32.mrb[0].mxu0
    %403 = vmatprep.mubr.f32.mxu0 0.0
    %404 = vmatmul.mubr.f32.gmra.mrb[0].mxu0 %v323
    %v405 = vpop.f32.mrb[0].mxu0
    %v406 = vadd.f32 %v301, %v405
    %v407 = vpop.f32.mrb[0].mxu0
    %408 = vmatprep.mubr.f32.mxu0 0.0
    %409 = vmatmul.mubr.f32.gmra.mrb[0].mxu0 %v326
    %v410 = vpop.f32.mrb[0].mxu0
    %v411 = vadd.f32 %v306, %v410
    %v412 = vpop.f32.mrb[0].mxu0
    %413 = vmatprep.mubr.f32.mxu0 0.0
    %414 = vmatmul.mubr.f32.gmra.mrb[0].mxu0 %v329
    %v415 = vpop.f32.mrb[0].mxu0
    %v416 = vadd.f32 %v311, %v415
    %v417 = vpop.f32.mrb[0].mxu0
    %418 = vmatprep.mubr.f32.mxu0 0.0
    %419 = vmatmul.mubr.f32.gmra.mrb[0].mxu0 %v332
    %v420 = vpop.f32.mrb[0].mxu0
    %v421 = vadd.f32 %v316, %v420
    %v422 = vpop.f32.mrb[0].mxu0
    %423 = vdwg.mxu0
    %vm424 = vcmask 15360
    %v425 = vsel %vm424, %v401, -inf
    %426 = vmax.xlane.f32.xlu0 %v425
    %v427 = vpop.xlane.xlu0 %426
    %v428 = vsel %vm424, %v406, -inf
    %429 = vmax.xlane.f32.xlu0 %v428
    %v430 = vpop.xlane.xlu0 %429
    %v431 = vsel %vm424, %v411, -inf
    %432 = vmax.xlane.f32.xlu0 %v431
    %v433 = vpop.xlane.xlu0 %432
    %v434 = vsel %vm424, %v416, -inf
    %435 = vmax.xlane.f32.xlu0 %v434
    %v436 = vpop.xlane.xlu0 %435
    %v437 = vsel %vm424, %v421, -inf
    %438 = vmax.xlane.f32.xlu0 %v437
    %v439 = vpop.xlane.xlu0 %438
    %v440 = vsub.f32 %v401, %v427
    %v441 = vsub.f32 %v406, %v430
    %v442 = vsub.f32 %v411, %v433
    %v443 = vsub.f32 %v416, %v436
    %v444 = vsub.f32 %v421, %v439
    %v445 = vmul.f32 %v440, 1.442695
    %v446 = vpow.pop %v445
    %v447 = vmul.f32 %v441, 1.442695
    %v448 = vpow.pop %v447
    %v449 = vmul.f32 %v442, 1.442695
    %v450 = vpow.pop %v449
    %v451 = vmul.f32 %v443, 1.442695
    %v452 = vpow.pop %v451
    %v453 = vmul.f32 %v444, 1.442695
    %v454 = vpow.pop %v453
    %v455 = vsel %vm424, %v446, 0.0
    %456 = vadd.xlane.f32.xlu0 %v455
    %v457 = vpop.xlane.xlu0 %456
    %v458 = vsel %vm424, %v448, 0.0
    %459 = vadd.xlane.f32.xlu0 %v458
    %v460 = vpop.xlane.xlu0 %459
    %v461 = vsel %vm424, %v450, 0.0
    %462 = vadd.xlane.f32.xlu0 %v461
    %v463 = vpop.xlane.xlu0 %462
    %v464 = vsel %vm424, %v452, 0.0
    %465 = vadd.xlane.f32.xlu0 %v464
    %v466 = vpop.xlane.xlu0 %465
    %v467 = vsel %vm424, %v454, 0.0
    %468 = vadd.xlane.f32.xlu0 %v467
    %v469 = vpop.xlane.xlu0 %468
    %v470 = vlog2.pop %v457
    %v471 = vmul.f32 %v470, 0.6931472
    %v472 = vlog2.pop %v460
    %v473 = vmul.f32 %v472, 0.6931472
    %v474 = vlog2.pop %v463
    %v475 = vmul.f32 %v474, 0.6931472
    %v476 = vlog2.pop %v466
    %v477 = vmul.f32 %v476, 0.6931472
    %v478 = vlog2.pop %v469
    %v479 = vmul.f32 %v478, 0.6931472
    %v480 = vsub.f32 %v440, %v471
    %v481 = vsub.f32 %v441, %v473
    %v482 = vsub.f32 %v442, %v475
    %v483 = vsub.f32 %v443, %v477
    %v484 = vsub.f32 %v444, %v479
    %v485 = vmul.f32 %v480, %v209
    %v486 = vmul.f32 %v481, %v210
    %v487 = vmul.f32 %v482, %v211
    %v488 = vmul.f32 %v483, %v212
    %v489 = vmul.f32 %v484, %v213
    %v490 = vsel %vm424, %v485, 0.0
    %v491 = vsel %vm424, %v486, 0.0
    %v492 = vadd.f32 %v490, %v491
    %v493 = vsel %vm424, %v487, 0.0
    %v494 = vadd.f32 %v492, %v493
    %v495 = vsel %vm424, %v488, 0.0
    %v496 = vadd.f32 %v494, %v495
    %v497 = vsel %vm424, %v489, 0.0
    %v498 = vadd.f32 %v496, %v497
    %499 = vadd.xlane.f32.xlu0 %v498
    %v500 = vpop.xlane.xlu0 %499
    %v501 = vrot.slane %v500, 4
    %v502 = vadd.f32 %v500, %v501
    %v503 = vrot.slane %v502, 2
    %v504 = vadd.f32 %v502, %v503
    %v505 = vrot.slane %v504, 1
    %v506 = vadd.f32 %v504, %v505
    %s507 = vtos %v506
    %s508 = ssub.f32 0.0, %s507
    %v509 = vld [vmem:[%s7] sm:$0xff]
    %v510 = vld [vmem:[%s7 + $0x8] sm:$0xff]
    %v511 = vld [vmem:[%s7 + $0x10] sm:$0xff]
    %v513 = vsel %vm88, %v67, 0
    %v516 = vsel %vm88, %v68, 0
    %v519 = vsel %vm88, %v69, 0
    %521 = vmatprep.subr.mxu0 0.0
    %522 = vmatpush1.msra.mxu0 %v41
    %523 = vmatprep.subr.mxu0 0.0
    %524 = vmatpush1.msra.mxu0 %v42
    %525 = vmatprep.subr.mxu0 0.0
    %526 = vmatpush1.msra.mxu0 %v43
    %527 = vmatprep.subr.mxu0 0.0
    %528 = vmatpush1.msra.mxu0 %v44
    %529 = vmatprep.subr.mxu0 0.0
    %530 = vmatpush1.msra.mxu0 %v45
    %531 = vmatprep.subr.mxu0 0.0
    %532 = vmatpush1.msra.mxu0 %v46
    %533 = vmatprep.subr.mxu0 0.0
    %534 = vmatpush1.msra.mxu0 %v47
    %535 = vmatprep.subr.mxu0 0.0
    %536 = vmatpush1.msra.mxu0 %v48
    %537 = vmatprep.subr.mxu0 0.0
    %538 = vmatpush1.msra.mxu0 0.0
    %539 = vmatprep.subr.mxu0 0.0
    %540 = vmatpush1.msra.mxu0 0.0
    %541 = vmatprep.subr.mxu0 0.0
    %542 = vmatpush1.msra.mxu0 0.0
    %543 = vmatprep.subr.mxu0 0.0
    %544 = vmatpush1.msra.mxu0 0.0
    %545 = vmatprep.subr.mxu0 0.0
    %546 = vmatpush1.msra.mxu0 0.0
    %547 = vmatprep.subr.mxu0 0.0
    %548 = vmatpush1.msra.mxu0 0.0
    %549 = vmatprep.subr.mxu0 0.0
    %550 = vmatpush1.msra.mxu0 0.0
    %551 = vmatprep.subr.mxu0 0.0
    %552 = vmatpush1.msra.mxu0 0.0
    %553 = vmatprep.subr.mxu0 0.0
    %554 = vmatpush1.msra.mxu0 0.0
    %555 = vmatprep.subr.mxu0 0.0
    %556 = vmatpush1.msra.mxu0 0.0
    %557 = vmatprep.subr.mxu0 0.0
    %558 = vmatpush1.msra.mxu0 0.0
    %559 = vmatprep.subr.mxu0 0.0
    %560 = vmatpush1.msra.mxu0 0.0
    %561 = vmatprep.subr.mxu0 0.0
    %562 = vmatpush1.msra.mxu0 0.0
    %563 = vmatprep.subr.mxu0 0.0
    %564 = vmatpush1.msra.mxu0 0.0
    %565 = vmatprep.subr.mxu0 0.0
    %566 = vmatpush1.msra.mxu0 0.0
    %567 = vmatprep.subr.mxu0 0.0
    %568 = vmatpush1.msra.mxu0 0.0
    %569 = vmatprep.subr.mxu0 0.0
    %570 = vmatpush1.msra.mxu0 0.0
    %571 = vmatprep.subr.mxu0 0.0
    %572 = vmatpush1.msra.mxu0 0.0
    %573 = vmatprep.subr.mxu0 0.0
    %574 = vmatpush1.msra.mxu0 0.0
    %575 = vmatprep.subr.mxu0 0.0
    %576 = vmatpush1.msra.mxu0 0.0
    %577 = vmatprep.subr.mxu0 0.0
    %578 = vmatpush1.msra.mxu0 0.0
    %579 = vmatprep.subr.mxu0 0.0
    %580 = vmatpush1.msra.mxu0 0.0
    %581 = vmatprep.subr.mxu0 0.0
    %582 = vmatpush1.msra.mxu0 0.0
    %583 = vmatprep.subr.mxu0 0.0
    %584 = vmatpush1.msra.mxu0 0.0
    %585 = vmatprep.mubr.f32.mxu0 0.0
    %586 = vmatmul.mubr.f32.gmra.mrb[0].mxu0 %v513
    %v587 = vpop.f32.mrb[0].mxu0
    %v588 = vadd.f32 0.0, %v587
    %v589 = vpop.f32.mrb[0].mxu0
    %590 = vmatprep.mubr.f32.mxu0 0.0
    %591 = vmatmul.mubr.f32.gmra.mrb[0].mxu0 %v516
    %v592 = vpop.f32.mrb[0].mxu0
    %v593 = vadd.f32 0.0, %v592
    %v594 = vpop.f32.mrb[0].mxu0
    %595 = vmatprep.mubr.f32.mxu0 0.0
    %596 = vmatmul.mubr.f32.gmra.mrb[0].mxu0 %v519
    %v597 = vpop.f32.mrb[0].mxu0
    %v598 = vadd.f32 0.0, %v597
    %v599 = vpop.f32.mrb[0].mxu0
    %600 = vdwg.mxu0
    %v602 = vsel %vm88, %v64, 0
    %v605 = vsel %vm88, %v65, 0
    %v608 = vsel %vm88, %v66, 0
    %610 = vmatprep.subr.mxu0 0.0
    %611 = vmatpush1.msra.mxu0 %v33
    %612 = vmatprep.subr.mxu0 0.0
    %613 = vmatpush1.msra.mxu0 %v34
    %614 = vmatprep.subr.mxu0 0.0
    %615 = vmatpush1.msra.mxu0 %v35
    %616 = vmatprep.subr.mxu0 0.0
    %617 = vmatpush1.msra.mxu0 %v36
    %618 = vmatprep.subr.mxu0 0.0
    %619 = vmatpush1.msra.mxu0 %v37
    %620 = vmatprep.subr.mxu0 0.0
    %621 = vmatpush1.msra.mxu0 %v38
    %622 = vmatprep.subr.mxu0 0.0
    %623 = vmatpush1.msra.mxu0 %v39
    %624 = vmatprep.subr.mxu0 0.0
    %625 = vmatpush1.msra.mxu0 %v40
    %626 = vmatprep.subr.mxu0 0.0
    %627 = vmatpush1.msra.mxu0 0.0
    %628 = vmatprep.subr.mxu0 0.0
    %629 = vmatpush1.msra.mxu0 0.0
    %630 = vmatprep.subr.mxu0 0.0
    %631 = vmatpush1.msra.mxu0 0.0
    %632 = vmatprep.subr.mxu0 0.0
    %633 = vmatpush1.msra.mxu0 0.0
    %634 = vmatprep.subr.mxu0 0.0
    %635 = vmatpush1.msra.mxu0 0.0
    %636 = vmatprep.subr.mxu0 0.0
    %637 = vmatpush1.msra.mxu0 0.0
    %638 = vmatprep.subr.mxu0 0.0
    %639 = vmatpush1.msra.mxu0 0.0
    %640 = vmatprep.subr.mxu0 0.0
    %641 = vmatpush1.msra.mxu0 0.0
    %642 = vmatprep.subr.mxu0 0.0
    %643 = vmatpush1.msra.mxu0 0.0
    %644 = vmatprep.subr.mxu0 0.0
    %645 = vmatpush1.msra.mxu0 0.0
    %646 = vmatprep.subr.mxu0 0.0
    %647 = vmatpush1.msra.mxu0 0.0
    %648 = vmatprep.subr.mxu0 0.0
    %649 = vmatpush1.msra.mxu0 0.0
    %650 = vmatprep.subr.mxu0 0.0
    %651 = vmatpush1.msra.mxu0 0.0
    %652 = vmatprep.subr.mxu0 0.0
    %653 = vmatpush1.msra.mxu0 0.0
    %654 = vmatprep.subr.mxu0 0.0
    %655 = vmatpush1.msra.mxu0 0.0
    %656 = vmatprep.subr.mxu0 0.0
    %657 = vmatpush1.msra.mxu0 0.0
    %658 = vmatprep.subr.mxu0 0.0
    %659 = vmatpush1.msra.mxu0 0.0
    %660 = vmatprep.subr.mxu0 0.0
    %661 = vmatpush1.msra.mxu0 0.0
    %662 = vmatprep.subr.mxu0 0.0
    %663 = vmatpush1.msra.mxu0 0.0
    %664 = vmatprep.subr.mxu0 0.0
    %665 = vmatpush1.msra.mxu0 0.0
    %666 = vmatprep.subr.mxu0 0.0
    %667 = vmatpush1.msra.mxu0 0.0
    %668 = vmatprep.subr.mxu0 0.0
    %669 = vmatpush1.msra.mxu0 0.0
    %670 = vmatprep.subr.mxu0 0.0
    %671 = vmatpush1.msra.mxu0 0.0
    %672 = vmatprep.subr.mxu0 0.0
    %673 = vmatpush1.msra.mxu0 0.0
    %674 = vmatprep.mubr.f32.mxu0 0.0
    %675 = vmatmul.mubr.f32.gmra.mrb[0].mxu0 %v602
    %v676 = vpop.f32.mrb[0].mxu0
    %v677 = vadd.f32 %v588, %v676
    %v678 = vpop.f32.mrb[0].mxu0
    %679 = vmatprep.mubr.f32.mxu0 0.0
    %680 = vmatmul.mubr.f32.gmra.mrb[0].mxu0 %v605
    %v681 = vpop.f32.mrb[0].mxu0
    %v682 = vadd.f32 %v593, %v681
    %v683 = vpop.f32.mrb[0].mxu0
    %684 = vmatprep.mubr.f32.mxu0 0.0
    %685 = vmatmul.mubr.f32.gmra.mrb[0].mxu0 %v608
    %v686 = vpop.f32.mrb[0].mxu0
    %v687 = vadd.f32 %v598, %v686
    %v688 = vpop.f32.mrb[0].mxu0
    %689 = vdwg.mxu0
    %v690 = vsel %vm424, %v677, -inf
    %691 = vmax.xlane.f32.xlu0 %v690
    %v692 = vpop.xlane.xlu0 %691
    %v693 = vsel %vm424, %v682, -inf
    %694 = vmax.xlane.f32.xlu0 %v693
    %v695 = vpop.xlane.xlu0 %694
    %v696 = vsel %vm424, %v687, -inf
    %697 = vmax.xlane.f32.xlu0 %v696
    %v698 = vpop.xlane.xlu0 %697
    %v699 = vsub.f32 %v677, %v692
    %v700 = vsub.f32 %v682, %v695
    %v701 = vsub.f32 %v687, %v698
    %v702 = vmul.f32 %v699, 1.442695
    %v703 = vpow.pop %v702
    %v704 = vmul.f32 %v700, 1.442695
    %v705 = vpow.pop %v704
    %v706 = vmul.f32 %v701, 1.442695
    %v707 = vpow.pop %v706
    %v708 = vsel %vm424, %v703, 0.0
    %709 = vadd.xlane.f32.xlu0 %v708
    %v710 = vpop.xlane.xlu0 %709
    %v711 = vsel %vm424, %v705, 0.0
    %712 = vadd.xlane.f32.xlu0 %v711
    %v713 = vpop.xlane.xlu0 %712
    %v714 = vsel %vm424, %v707, 0.0
    %715 = vadd.xlane.f32.xlu0 %v714
    %v716 = vpop.xlane.xlu0 %715
    %v717 = vlog2.pop %v710
    %v718 = vmul.f32 %v717, 0.6931472
    %v719 = vlog2.pop %v713
    %v720 = vmul.f32 %v719, 0.6931472
    %v721 = vlog2.pop %v716
    %v722 = vmul.f32 %v721, 0.6931472
    %v723 = vsub.f32 %v699, %v718
    %v724 = vsub.f32 %v700, %v720
    %v725 = vsub.f32 %v701, %v722
    %v726 = vmul.f32 %v723, %v509
    %v727 = vmul.f32 %v724, %v510
    %v728 = vmul.f32 %v725, %v511
    %v729 = vsel %vm424, %v726, 0.0
    %v730 = vsel %vm424, %v727, 0.0
    %v731 = vadd.f32 %v729, %v730
    %v732 = vsel %vm424, %v728, 0.0
    %v733 = vadd.f32 %v731, %v732
    %734 = vadd.xlane.f32.xlu0 %v733
    %v735 = vpop.xlane.xlu0 %734
    %v736 = vrot.slane %v735, 4
    %v737 = vadd.f32 %v735, %v736
    %v738 = vrot.slane %v737, 2
    %v739 = vadd.f32 %v737, %v738
    %v740 = vrot.slane %v739, 1
    %v741 = vadd.f32 %v739, %v740
    %s742 = vtos %v741
    %s743 = ssub.f32 0.0, %s742
    %s744 = sadd.f32 %s508, %s743
    %v745 = vrcp.pop 64.0
    %s746 = vtos %v745
    %s747 = smul.f32 %s744, %s746
    %s748 = sadd.f32 %s155, %s208
    %s749 = sadd.f32 %s747, %s748
    %v750 = vstv %s749
    %751 = vst [vmem:[#allocation2] sm:$0x1] %v750
    // Predicated region
    $region38: #{sgcn_forward.5} parent=1 // pred_check
      _
    $region39: #{sgcn_forward.5} parent=1 // pred_check_branch
      %753 = sbr.rel (0) target = $region41
    $region40: #{sgcn_forward.5} parent=1 // pred_region
      %s755 = ssub.s32 16, 16
      %756 = vsyncadd [#allocation3], %s755
      %s758 = sshll.u32 [#allocation2], 4
      %s759 = int_to_ptr.vmem [resolvable:$true] %s758
      %761 = dma.vmem_to_hbm [thread:$0]  %s759, 16, %s9, [#allocation3]
    $region41: #{sgcn_forward.5} parent=1 // pred_fallthru
      _
    // Predicated region
    $region42: #{sgcn_forward.5} parent=1 // pred_check
      _
    $region43: #{sgcn_forward.5} parent=1 // pred_check_branch
      %763 = sbr.rel (0) target = $region45
    $region44: #{sgcn_forward.5} parent=1 // pred_region
      %764 = dma.done [#allocation3], 16
    $region45: #{sgcn_forward.5} parent=1 // pred_fallthru
      _
    %765 = vsyncpa [#allocation3], 1

</llo_original>
